<compile_context>
chip_gen: v7x
topology: tpu7x:2x2x1
jax: 0.10.0
libtpu: 0.0.40
codegen_flags: <defaults>
</compile_context>

<pallas_src>
import functools
import math

import jax
import jax.numpy as jnp
from jax.experimental import pallas as pl
from jax.experimental.pallas import tpu as pltpu


def _round_up(a, b):
    return ((a + b - 1) // b) * b


def _ln_kernel_packed(x_ref, g_ref, b_ref, e_ref, o_ref, *, dim, eps):
    # x_ref: (tmw, wide) with P = wide // dim logical rows packed per lane row.
    # e_ref: (wide, wide) block-diagonal ones; x @ E = per-segment sums
    #        broadcast back to every lane of the segment (runs on the MXU).
    x = x_ref[...].astype(jnp.float32)
    e = e_ref[...]
    inv_d = jnp.float32(1.0 / dim)

    sum_b = jnp.dot(x, e, preferred_element_type=jnp.float32,
                    precision=jax.lax.Precision.HIGHEST)
    mean = sum_b * inv_d
    xc = x - mean

    sq = xc * xc
    var = jnp.dot(sq, e, preferred_element_type=jnp.float32,
                  precision=jax.lax.Precision.HIGHEST) * inv_d

    y = xc * jax.lax.rsqrt(var + jnp.float32(eps))       # rsqrt on the EUP
    o_ref[...] = (y * g_ref[...] + b_ref[...]).astype(o_ref.dtype)


def _ln_kernel_plain(x_ref, g_ref, b_ref, o_ref, *, eps):
    # Fallback: one logical row per block row (dim not lane-packable or
    # row count not a multiple of the packing factor).
    x = x_ref[...].astype(jnp.float32)
    mean = jnp.mean(x, axis=-1, keepdims=True)
    xc = x - mean
    var = jnp.mean(xc * xc, axis=-1, keepdims=True)
    y = xc * jax.lax.rsqrt(var + jnp.float32(eps))
    o_ref[...] = (y * g_ref[...] + b_ref[...]).astype(o_ref.dtype)


def layer_norm(x, gamma, beta, *, eps=1e-5, block_rows=4096):
    """LayerNorm over the last dim of x as a Pallas TPU kernel.  x: (..., D)."""
    orig_shape = x.shape
    D = orig_shape[-1]
    M = math.prod(orig_shape[:-1]) if len(orig_shape) > 1 else 1
    xf = x.reshape(M, D)                       # free contiguous reshape

    # Lane packing: P consecutive logical rows per 128-lane row (free reshape,
    # no transpose) -> full-lane vld/vst instead of masked partials.
    if D <= 128 and 128 % D == 0 and (128 // D) > 1 and M % (128 // D) == 0:
        P = 128 // D
    else:
        P = 1
    wide = P * D
    mw = M // P
    xw = xf.reshape(mw, wide)                  # free contiguous reshape

    # dtype-aware sublane quantum: f32 -> 8, bf16 -> 16, int8/fp8 -> 32.
    itemsize = jnp.dtype(x.dtype).itemsize
    sub = max(8, 32 // itemsize)

    # Row tile: large blocks for HBM-roofline pipelining, capped so the grid
    # keeps >= 4 steps (v7x 2-TC sharding / double buffering stays effective).
    desired = max(block_rows // P, sub)
    cap = _round_up(pl.cdiv(mw, 4), sub)
    tmw = _round_up(min(desired, max(cap, sub)), sub)
    tmw = min(tmw, _round_up(mw, sub))
    grid = pl.cdiv(mw, tmw)                    # no pad: last block write-masked

    g_row = jnp.tile(gamma.astype(jnp.float32).reshape(1, D), (1, P))
    b_row = jnp.tile(beta.astype(jnp.float32).reshape(1, D), (1, P))

    # Conservative working-set estimate; only raise the scoped VMEM limit when
    # needed (v5e default 16 MiB), staying well under v7x's 64 MiB physical.
    vmem_needed = 4 * tmw * wide * itemsize + 2 * wide * wide * 4 + (2 << 20)
    cparams = dict(dimension_semantics=("parallel",))
    if vmem_needed > (16 << 20):
        cparams["vmem_limit_bytes"] = int(min(vmem_needed, 56 << 20))
    compiler_params = pltpu.CompilerParams(**cparams)

    row_spec = pl.BlockSpec((tmw, wide), lambda i: (i, 0))
    vec_spec = pl.BlockSpec((1, wide), lambda i: (0, 0))      # VMEM resident

    if P > 1:
        # Block-diagonal 0/1 matrix for the MXU segmented reduce+broadcast.
        e_mat = jnp.kron(jnp.eye(P, dtype=jnp.float32),
                         jnp.ones((D, D), jnp.float32))
        kernel = functools.partial(_ln_kernel_packed, dim=D, eps=eps)
        in_specs = [row_spec, vec_spec, vec_spec,
                    pl.BlockSpec((wide, wide), lambda i: (0, 0))]
        operands = (xw, g_row, b_row, e_mat)
    else:
        kernel = functools.partial(_ln_kernel_plain, eps=eps)
        in_specs = [row_spec, vec_spec, vec_spec]
        operands = (xw, g_row, b_row)

    out_w = pl.pallas_call(
        kernel,
        out_shape=jax.ShapeDtypeStruct((mw, wide), x.dtype),
        grid_spec=pltpu.PrefetchScalarGridSpec(
            num_scalar_prefetch=0,
            grid=(grid,),
            in_specs=in_specs,
            out_specs=row_spec,
        ),
        compiler_params=compiler_params,
    )(*operands)

    return out_w.reshape(M, D).reshape(orig_shape)   # free contiguous reshapes


def pre_norm(x, gamma, beta, fn, *, eps=1e-5, block_rows=4096):
    """PreNorm.forward: fn(LayerNorm(x))."""
    # TODO(synk): `fn` is the arbitrary wrapped sub-module (attention / FFN in
    # MixFormer); it has no fixed Pallas form here and is applied as a plain
    # JAX callable on the kernel's output.
    return fn(layer_norm(x, gamma, beta, eps=eps, block_rows=block_rows))


def _layer_norm_ref(x, gamma, beta, eps=1e-5):
    mu = jnp.mean(x, axis=-1, keepdims=True)
    var = jnp.mean((x - mu) ** 2, axis=-1, keepdims=True)
    return (x - mu) * jax.lax.rsqrt(var + eps) * gamma + beta


if __name__ == "__main__":
    # Small shapes consistent with PreNorm over tokens: (batch, seq, dim).
    B, N, dim = 2, 64, 32

    key = jax.random.PRNGKey(0)
    kx, kg, kb, kw, kb2 = jax.random.split(key, 5)

    x = jax.random.normal(kx, (B, N, dim), dtype=jnp.float32)
    gamma = 1.0 + 0.1 * jax.random.normal(kg, (dim,), dtype=jnp.float32)
    beta = 0.1 * jax.random.normal(kb, (dim,), dtype=jnp.float32)

    # Simple deterministic stand-in for the wrapped sub-module `fn`.
    w_fn = jax.random.normal(kw, (dim, dim), dtype=jnp.float32) / dim ** 0.5
    b_fn = 0.01 * jax.random.normal(kb2, (dim,), dtype=jnp.float32)
    fn = lambda y: jax.nn.gelu(y @ w_fn + b_fn, approximate=False)

    # Small tile so the demo exercises a multi-step pipelined grid (grid=4).
    out = pre_norm(x, gamma, beta, fn, block_rows=64)
    out = jax.block_until_ready(out)

    ln_out = layer_norm(x, gamma, beta, block_rows=64)
    ln_ref = _layer_norm_ref(x, gamma, beta)
    ref = fn(ln_ref)

    assert out.shape == (B, N, dim)
    assert jnp.allclose(ln_out, ln_ref, rtol=1e-5, atol=1e-5), (
        f"LN max abs err {jnp.max(jnp.abs(ln_out - ln_ref))}")
    assert jnp.allclose(out, ref, rtol=1e-5, atol=1e-5), (
        f"max abs err {jnp.max(jnp.abs(out - ref))}")

    # Also exercise the unpacked fallback + non-divisible grid (row count 15).
    x_odd = jax.random.normal(kx, (3, 5, dim), dtype=jnp.float32)
    ln_odd = layer_norm(x_odd, gamma, beta)
    ln_odd = jax.block_until_ready(ln_odd)
    assert jnp.allclose(ln_odd, _layer_norm_ref(x_odd, gamma, beta),
                        rtol=1e-5, atol=1e-5), "fallback path mismatch"

    print("KERNEL_OK")
</pallas_src>

<mosaic_0001>
module attributes {stable_mosaic.version = 11 : i64} {
  func.func @_ln_kernel_packed(%arg0: i32, %arg1: memref<8x128xf32, #tpu.memory_space<vmem>>, %arg2: memref<1x128xf32, #tpu.memory_space<vmem>>, %arg3: memref<1x128xf32, #tpu.memory_space<vmem>>, %arg4: memref<128x128xf32, #tpu.memory_space<vmem>>, %arg5: memref<8x128xf32, #tpu.memory_space<vmem>>) attributes {dimension_semantics = [#tpu.dimension_semantics<parallel>], iteration_bounds = array<i64: 4>, scalar_prefetch = 0 : i64, scratch_operands = 0 : i64, tpu.core_type = #tpu.core_type<tc>, window_params = [{transform_indices = @transform_0, window_bounds = array<i64: 8, 128>}, {pipeline_mode = #tpu.pipeline_mode<synchronous>, transform_indices = @transform_1, window_bounds = array<i64: 1, 128>}, {pipeline_mode = #tpu.pipeline_mode<synchronous>, transform_indices = @transform_2, window_bounds = array<i64: 1, 128>}, {pipeline_mode = #tpu.pipeline_mode<synchronous>, transform_indices = @transform_3, window_bounds = array<i64: 128, 128>}, {transform_indices = @transform_4, window_bounds = array<i64: 8, 128>}]} {
    %c0 = arith.constant 0 : index
    %c0_0 = arith.constant 0 : index
    %0 = vector.load %arg1[%c0, %c0_0] : memref<8x128xf32, #tpu.memory_space<vmem>>, vector<8x128xf32>
    %c0_1 = arith.constant 0 : index
    %c0_2 = arith.constant 0 : index
    %1 = vector.load %arg4[%c0_1, %c0_2] : memref<128x128xf32, #tpu.memory_space<vmem>>, vector<128x128xf32>
    %cst = arith.constant dense<0.000000e+00> : vector<8x128xf32>
    %2 = tpu.matmul %0, %1, %cst {dimension_numbers = #tpu.dot_dimension_numbers<[1], [0], [0], [1], [0, 0, 1, 1], [], []>, precision = #tpu.contract_precision<fp32>} : vector<8x128xf32>, vector<128x128xf32>, vector<8x128xf32> -> vector<8x128xf32>
    %cst_3 = arith.constant 3.125000e-02 : f32
    %3 = vector.broadcast %cst_3 : f32 to vector<8x128xf32>
    %4 = arith.mulf %2, %3 : vector<8x128xf32>
    %5 = arith.subf %0, %4 : vector<8x128xf32>
    %6 = arith.mulf %5, %5 : vector<8x128xf32>
    %cst_4 = arith.constant dense<0.000000e+00> : vector<8x128xf32>
    %7 = tpu.matmul %6, %1, %cst_4 {dimension_numbers = #tpu.dot_dimension_numbers<[1], [0], [0], [1], [0, 0, 1, 1], [], []>, precision = #tpu.contract_precision<fp32>} : vector<8x128xf32>, vector<128x128xf32>, vector<8x128xf32> -> vector<8x128xf32>
    %cst_5 = arith.constant 3.125000e-02 : f32
    %8 = vector.broadcast %cst_5 : f32 to vector<8x128xf32>
    %9 = arith.mulf %7, %8 : vector<8x128xf32>
    %cst_6 = arith.constant 9.99999974E-6 : f32
    %10 = vector.broadcast %cst_6 : f32 to vector<8x128xf32>
    %11 = arith.addf %9, %10 : vector<8x128xf32>
    %12 = math.rsqrt %11 : vector<8x128xf32>
    %13 = arith.mulf %5, %12 : vector<8x128xf32>
    %c0_7 = arith.constant 0 : index
    %c0_8 = arith.constant 0 : index
    %14 = vector.load %arg2[%c0_7, %c0_8] : memref<1x128xf32, #tpu.memory_space<vmem>>, vector<1x128xf32>
    %15 = vector.broadcast %14 : vector<1x128xf32> to vector<8x128xf32>
    %16 = arith.mulf %13, %15 : vector<8x128xf32>
    %c0_9 = arith.constant 0 : index
    %c0_10 = arith.constant 0 : index
    %17 = vector.load %arg3[%c0_9, %c0_10] : memref<1x128xf32, #tpu.memory_space<vmem>>, vector<1x128xf32>
    %18 = vector.broadcast %17 : vector<1x128xf32> to vector<8x128xf32>
    %19 = arith.addf %16, %18 : vector<8x128xf32>
    %c0_11 = arith.constant 0 : index
    %c0_12 = arith.constant 0 : index
    %20 = vector.load %arg5[%c0_11, %c0_12] : memref<8x128xf32, #tpu.memory_space<vmem>>, vector<8x128xf32>
    tpu.vector_store %arg5[%c0_11, %c0_12], %19 {strides = array<i32>} : memref<8x128xf32, #tpu.memory_space<vmem>>, vector<8x128xf32>,
    return
  }
  func.func @transform_0(%arg0: i32) -> (i32, i32) {
    %c0_i32 = arith.constant 0 : i32
    %c0_i32_0 = arith.constant 0 : i32
    return %arg0, %c0_i32 : i32, i32
  }
  func.func @transform_1(%arg0: i32) -> (i32, i32) {
    %c0_i32 = arith.constant 0 : i32
    %c0_i32_0 = arith.constant 0 : i32
    %c0_i32_1 = arith.constant 0 : i32
    return %c0_i32, %c0_i32_0 : i32, i32
  }
  func.func @transform_2(%arg0: i32) -> (i32, i32) {
    %c0_i32 = arith.constant 0 : i32
    %c0_i32_0 = arith.constant 0 : i32
    %c0_i32_1 = arith.constant 0 : i32
    return %c0_i32, %c0_i32_0 : i32, i32
  }
  func.func @transform_3(%arg0: i32) -> (i32, i32) {
    %c0_i32 = arith.constant 0 : i32
    %c0_i32_0 = arith.constant 0 : i32
    %c0_i32_1 = arith.constant 0 : i32
    return %c0_i32, %c0_i32_0 : i32, i32
  }
  func.func @transform_4(%arg0: i32) -> (i32, i32) {
    %c0_i32 = arith.constant 0 : i32
    %c0_i32_0 = arith.constant 0 : i32
    return %arg0, %c0_i32 : i32, i32
  }
}

</mosaic_0001>

<llo_original>
// kernel: tpu_custom_call.1
$region0: #{tpu_custom_call.1}
  #allocation0 [shape = 'u32[]', space=smem, size = 0x4, offset = 0x4, fixed_abs, tag = 'smem constant byte address 0x4 - core index']
  #allocation1 [shape = 'u32[144,128]{1,0:T(1,128)}', space=vmem, size = 0x12000, scoped, tag = 'internal scratch']
  %s0 = inlined_call_operand.hbm [shape: f32[32,128], index: 0, kind: input, shape index: {}]
  %s1 = inlined_call_operand.vmem [shape: f32[1,128], index: 1, kind: input, shape index: {}]
  %s2 = inlined_call_operand.vmem [shape: f32[1,128], index: 2, kind: input, shape index: {}]
  %s3 = inlined_call_operand.hbm [shape: f32[128,128], index: 3, kind: input, shape index: {}]
  %s4 = inlined_call_operand.hbm [shape: f32[32,128], index: 4, kind: output, shape index: {}]
  %s5 = sld [smem:[#allocation0]]
  $region57: #{tpu_custom_call.1} parent=0
    _
  %s7 = ssub.s32 1, %s5
  %s8 = scalar_select 0, %s7, %s5
  $region1: #{tpu_custom_call.1} parent=0
    #allocation2 [shape = 'u8[8192]{0}', space=vmem, size = 0x2000, scoped, tag = 'input window, operand 0']
    #allocation3 [shape = 's32[2]{0}', space=sflag, size = 0x8, scoped, tag = 'scoped memory for tpu_custom_call.1']
    #allocation4 [shape = 's32[2]{0}', space=sflag, size = 0x8, scoped, tag = 'scoped memory for tpu_custom_call.1']
    #allocation5 [shape = 'u8[65536]{0}', space=vmem, size = 0x10000, scoped, tag = 'input window, operand 3, single buffered']
    #allocation6 [shape = 's32[1]{0}', space=sflag, size = 0x4, scoped, tag = 'scoped memory for tpu_custom_call.1']
    #allocation7 [shape = 'u8[8192]{0}', space=vmem, size = 0x2000, scoped, tag = 'output window, operand 0']
    %9 = vsyncpa [#allocation3], 0
    %s10 = scalar_lea.sflag [#allocation3], 1
    %11 = vsyncpa %s10, 0
    %12 = vsyncpa [#allocation6], 0
    %13 = vsyncpa [#allocation4], 0
    %s14 = scalar_lea.sflag [#allocation4], 1
    %15 = vsyncpa %s14, 0
    loop: start=0, step=1, limit=6
    $region2: #{tpu_custom_call.1} parent=1 // loop_pre_header
      _
    $region3: #{tpu_custom_call.1} parent=1 // loop_header
      %s17 = sphi 0, %s21
      %p18 = scmp.ge.s32.totalorder %s17, 6
      %s27 = sphi 0, %s29
      %s30 = sphi 0, %s27
      %s31 = sphi 0, %s30
      %s47 = sphi 0, %s31
      %s51 = sphi 0, %s51
      %s53 = sphi 0, %s51
      %s54 = sphi 0, %s53
      %s68 = sphi 0, %s54
      %s72 = sphi 0, %s72
      %s74 = sphi 0, %s72
      %s75 = sphi 0, %s74
      %s89 = sphi 0, %s75
      %s93 = sphi 0, %s93
      %s95 = sphi 0, %s93
      %s96 = sphi 0, %s95
      %s110 = sphi 0, %s96
      %s116 = sphi 0, %s118
      %s119 = sphi 0, %s116
      %s120 = sphi 0, %s119
      %s136 = sphi 0, %s120
    $region4: #{tpu_custom_call.1} parent=1 // loop_header_branch
      %20 = sbr.rel (%p18) target = $region8
    $region5: #{tpu_custom_call.1} parent=1 // loop_body
      %s22 = ssub.s32 %s17, 1
      %s23 = ssub.s32 %s17, 2
      %s24 = sadd.s32 %s17, 1
      %s25 = ssub.s32 %s17, %s24
      %p26 = scmp.eq.s32.totalorder %s25, 0
      %s28 = sadd.s32 %s27, 1
      %s29 = scalar_select %p26, %s27, %s28
      %p32 = pneg %p26
      %p33 = scmp.eq.s32.totalorder %s17, 3
      %p34 = por %p32, %p33
      %p35 = scmp.ne.s32.totalorder %s27, %s30
      %p36 = scmp.eq.s32.totalorder %s17, 0
      %p37 = por %p35, %p36
      %p38 = scmp.ne.s32.totalorder %s27, %s30
      %p39 = scmp.eq.s32.totalorder %s22, 3
      %p40 = por %p38, %p39
      %p41 = scmp.ne.s32.totalorder %s30, %s31
      %p42 = scmp.eq.s32.totalorder %s22, 0
      %p43 = por %p41, %p42
      %p44 = scmp.ne.s32.totalorder %s30, %s31
      %p45 = scmp.eq.s32.totalorder %s23, 3
      %p46 = por %p44, %p45
      %p48 = scmp.ne.s32.totalorder %s31, %s47
      %p49 = scmp.eq.s32.totalorder %s23, 0
      %p50 = por %p48, %p49
      %s52 = sadd.s32 %s51, 1
      %p55 = scmp.eq.s32.totalorder %s17, 3
      %p56 = scmp.ne.s32.totalorder %s51, %s53
      %p57 = scmp.eq.s32.totalorder %s17, 0
      %p58 = por %p56, %p57
      %p59 = scmp.ne.s32.totalorder %s51, %s53
      %p60 = scmp.eq.s32.totalorder %s22, 3
      %p61 = por %p59, %p60
      %p62 = scmp.ne.s32.totalorder %s53, %s54
      %p63 = scmp.eq.s32.totalorder %s22, 0
      %p64 = por %p62, %p63
      %p65 = scmp.ne.s32.totalorder %s53, %s54
      %p66 = scmp.eq.s32.totalorder %s23, 3
      %p67 = por %p65, %p66
      %p69 = scmp.ne.s32.totalorder %s54, %s68
      %p70 = scmp.eq.s32.totalorder %s23, 0
      %p71 = por %p69, %p70
      %s73 = sadd.s32 %s72, 1
      %p76 = scmp.eq.s32.totalorder %s17, 3
      %p77 = scmp.ne.s32.totalorder %s72, %s74
      %p78 = scmp.eq.s32.totalorder %s17, 0
      %p79 = por %p77, %p78
      %p80 = scmp.ne.s32.totalorder %s72, %s74
      %p81 = scmp.eq.s32.totalorder %s22, 3
      %p82 = por %p80, %p81
      %p83 = scmp.ne.s32.totalorder %s74, %s75
      %p84 = scmp.eq.s32.totalorder %s22, 0
      %p85 = por %p83, %p84
      %p86 = scmp.ne.s32.totalorder %s74, %s75
      %p87 = scmp.eq.s32.totalorder %s23, 3
      %p88 = por %p86, %p87
      %p90 = scmp.ne.s32.totalorder %s75, %s89
      %p91 = scmp.eq.s32.totalorder %s23, 0
      %p92 = por %p90, %p91
      %s94 = sadd.s32 %s93, 1
      %p97 = scmp.eq.s32.totalorder %s17, 3
      %p98 = scmp.ne.s32.totalorder %s93, %s95
      %p99 = scmp.eq.s32.totalorder %s17, 0
      %p100 = por %p98, %p99
      %p101 = scmp.ne.s32.totalorder %s93, %s95
      %p102 = scmp.eq.s32.totalorder %s22, 3
      %p103 = por %p101, %p102
      %p104 = scmp.ne.s32.totalorder %s95, %s96
      %p105 = scmp.eq.s32.totalorder %s22, 0
      %p106 = por %p104, %p105
      %p107 = scmp.ne.s32.totalorder %s95, %s96
      %p108 = scmp.eq.s32.totalorder %s23, 3
      %p109 = por %p107, %p108
      %p111 = scmp.ne.s32.totalorder %s96, %s110
      %p112 = scmp.eq.s32.totalorder %s23, 0
      %p113 = por %p111, %p112
      %s114 = ssub.s32 %s17, %s24
      %p115 = scmp.eq.s32.totalorder %s114, 0
      %s117 = sadd.s32 %s116, 1
      %s118 = scalar_select %p115, %s116, %s117
      %p121 = pneg %p115
      %p122 = scmp.eq.s32.totalorder %s17, 3
      %p123 = por %p121, %p122
      %p124 = scmp.ne.s32.totalorder %s116, %s119
      %p125 = scmp.eq.s32.totalorder %s17, 0
      %p126 = por %p124, %p125
      %p127 = scmp.ne.s32.totalorder %s116, %s119
      %p128 = scmp.eq.s32.totalorder %s22, 3
      %p129 = por %p127, %p128
      %p130 = scmp.ne.s32.totalorder %s119, %s120
      %p131 = scmp.eq.s32.totalorder %s22, 0
      %p132 = por %p130, %p131
      %p133 = scmp.ne.s32.totalorder %s119, %s120
      %p134 = scmp.eq.s32.totalorder %s23, 3
      %p135 = por %p133, %p134
      %p137 = scmp.ne.s32.totalorder %s120, %s136
      %p138 = scmp.eq.s32.totalorder %s23, 0
      %p139 = por %p137, %p138
      %p140 = scmp.le.s32.totalorder 1, %s17
      %p141 = scmp.lt.s32.totalorder %s17, 5
      %p142 = pnand %p140, %p141
      %p143 = pneg %p142
      // Predicated region
      $region9: #{tpu_custom_call.1} parent=5 // pred_check
        _
      $region10: #{tpu_custom_call.1} parent=5 // pred_check_branch
        %145 = sbr.rel (%p142) target = $region12
      $region11: #{tpu_custom_call.1} parent=5 // pred_region
        %s146 = ssub.s32 %s17, 1
        // Predicated region
        $region13: #{tpu_custom_call.1} parent=11 // pred_check
          %p147 = pneg %p64
        $region14: #{tpu_custom_call.1} parent=11 // pred_check_branch
          %149 = sbr.rel (%p147) target = $region16
        $region15: #{tpu_custom_call.1} parent=11 // pred_region
          _
        $region16: #{tpu_custom_call.1} parent=11 // pred_fallthru
          _
        // Predicated region
        $region17: #{tpu_custom_call.1} parent=11 // pred_check
          %p150 = pneg %p85
        $region18: #{tpu_custom_call.1} parent=11 // pred_check_branch
          %152 = sbr.rel (%p150) target = $region20
        $region19: #{tpu_custom_call.1} parent=11 // pred_region
          _
        $region20: #{tpu_custom_call.1} parent=11 // pred_fallthru
          _
        // Predicated region
        $region21: #{tpu_custom_call.1} parent=11 // pred_check
          %p153 = pneg %p106
        $region22: #{tpu_custom_call.1} parent=11 // pred_check_branch
          %155 = sbr.rel (%p153) target = $region24
        $region23: #{tpu_custom_call.1} parent=11 // pred_region
          %s157 = ssub.s32 2048, 2048
          %158 = vsyncadd [#allocation6], %s157
          %s159 = sshll.u32 [#allocation5], 4
          %s160 = int_to_ptr.vmem [resolvable:$true] %s159
          %165 = dma.hbm_to_vmem [thread:$0]  %s3, 2048, %s160, [#allocation6], 128, 128, 8
        $region24: #{tpu_custom_call.1} parent=11 // pred_fallthru
          _
      $region12: #{tpu_custom_call.1} parent=5 // pred_fallthru
        _
      %p166 = scmp.lt.s32.totalorder %s17, 4
      // Predicated region
      $region25: #{tpu_custom_call.1} parent=5 // pred_check
        %p167 = pneg %p166
      $region26: #{tpu_custom_call.1} parent=5 // pred_check_branch
        %169 = sbr.rel (%p167) target = $region28
      $region27: #{tpu_custom_call.1} parent=5 // pred_region
        // Predicated region
        $region29: #{tpu_custom_call.1} parent=27 // pred_check
          %p170 = pneg %p37
        $region30: #{tpu_custom_call.1} parent=27 // pred_check_branch
          %172 = sbr.rel (%p170) target = $region32
        $region31: #{tpu_custom_call.1} parent=27 // pred_region
          %s173 = sand.u32 %s27, 1
          %s174 = scalar_lea.sflag [#allocation3], %s173
          %s175 = sand.u32 %s27, 1
          %s176 = smul.addr %s175, 8
          %s177 = scalar_lea.vmem [#allocation2], %s176
          %s179 = ssub.s32 128, 128
          %180 = vsyncadd %s174, %s179
          %s181 = smul.addr %s17, 128
          %s182 = scalar_lea.hbm %s0, %s181
          %s184 = sshll.u32 %s177, 4
          %s185 = int_to_ptr.vmem [resolvable:$true] %s184
          %187 = dma.hbm_to_vmem [thread:$0]  %s182, 128, %s185, %s174
        $region32: #{tpu_custom_call.1} parent=27 // pred_fallthru
          _
      $region28: #{tpu_custom_call.1} parent=5 // pred_fallthru
        _
      %p188 = scmp.le.s32.totalorder 1, %s17
      %p189 = scmp.lt.s32.totalorder %s17, 5
      %p190 = pnand %p188, %p189
      %p191 = pneg %p190
      // Predicated region
      $region33: #{tpu_custom_call.1} parent=5 // pred_check
        _
      $region34: #{tpu_custom_call.1} parent=5 // pred_check_branch
        %193 = sbr.rel (%p190) target = $region36
      $region35: #{tpu_custom_call.1} parent=5 // pred_region
        %s194 = ssub.s32 %s17, 1
        %s195 = sand.u32 %s30, 1
        %s196 = scalar_lea.sflag [#allocation3], %s195
        %s197 = sand.u32 %s30, 1
        %s198 = smul.addr %s197, 8
        %s199 = scalar_lea.vmem [#allocation2], %s198
        // Predicated region
        $region37: #{tpu_custom_call.1} parent=35 // pred_check
          %p200 = pneg %p43
        $region38: #{tpu_custom_call.1} parent=35 // pred_check_branch
          %202 = sbr.rel (%p200) target = $region40
        $region39: #{tpu_custom_call.1} parent=35 // pred_region
          %203 = dma.done %s196, 128
        $region40: #{tpu_custom_call.1} parent=35 // pred_fallthru
          _
        // Predicated region
        $region41: #{tpu_custom_call.1} parent=35 // pred_check
          %p204 = pneg %p106
        $region42: #{tpu_custom_call.1} parent=35 // pred_check_branch
          %206 = sbr.rel (%p204) target = $region44
        $region43: #{tpu_custom_call.1} parent=35 // pred_region
          %207 = dma.done [#allocation6], 2048
        $region44: #{tpu_custom_call.1} parent=35 // pred_fallthru
          _
        %s208 = sand.u32 %s30, 1
        %s209 = scalar_lea.sflag [#allocation3], %s208
        %s210 = sand.u32 %s30, 1
        %s211 = smul.addr %s210, 8
        %s212 = scalar_lea.vmem [#allocation2], %s211
        %p213 = pneg %p43
        %p214 = pneg %p40
        %p215 = pneg %p64
        %p216 = pneg %p61
        %p217 = pneg %p85
        %p218 = pneg %p82
        %p219 = pneg %p106
        %p220 = pneg %p103
        %p221 = pneg %p132
        %p222 = pneg %p129
        %s223 = sand.u32 %s119, 1
        %s224 = scalar_lea.sflag [#allocation4], %s223
        %s225 = sand.u32 %s119, 1
        %s226 = smul.addr %s225, 8
        %s227 = scalar_lea.vmem [#allocation7], %s226
        %v228 = vld [vmem:[%s199] sm:$0xff]
        %v229 = vld [vmem:[#allocation5] sm:$0xff]
        %v230 = vld [vmem:[#allocation5 + $0x8] sm:$0xff]
        %v231 = vld [vmem:[#allocation5 + $0x10] sm:$0xff]
        %v232 = vld [vmem:[#allocation5 + $0x18] sm:$0xff]
        %v233 = vld [vmem:[#allocation5 + $0x20] sm:$0xff]
        %v234 = vld [vmem:[#allocation5 + $0x28] sm:$0xff]
        %v235 = vld [vmem:[#allocation5 + $0x30] sm:$0xff]
        %v236 = vld [vmem:[#allocation5 + $0x38] sm:$0xff]
        %v237 = vld [vmem:[#allocation5 + $0x40] sm:$0xff]
        %v238 = vld [vmem:[#allocation5 + $0x48] sm:$0xff]
        %v239 = vld [vmem:[#allocation5 + $0x50] sm:$0xff]
        %v240 = vld [vmem:[#allocation5 + $0x58] sm:$0xff]
        %v241 = vld [vmem:[#allocation5 + $0x60] sm:$0xff]
        %v242 = vld [vmem:[#allocation5 + $0x68] sm:$0xff]
        %v243 = vld [vmem:[#allocation5 + $0x70] sm:$0xff]
        %v244 = vld [vmem:[#allocation5 + $0x78] sm:$0xff]
        %245 = vmatprep.subr.mxu0 0.0
        %v246 = vand.u32 %v229, 4294901760
        %247 = vmatpush1.msra.mxu0 %v246
        %248 = vmatprep.subr.mxu0 0.0
        %v249 = vand.u32 %v230, 4294901760
        %250 = vmatpush1.msra.mxu0 %v249
        %251 = vmatprep.subr.mxu0 0.0
        %v252 = vand.u32 %v231, 4294901760
        %253 = vmatpush1.msra.mxu0 %v252
        %254 = vmatprep.subr.mxu0 0.0
        %v255 = vand.u32 %v232, 4294901760
        %256 = vmatpush1.msra.mxu0 %v255
        %257 = vmatprep.subr.mxu0 0.0
        %v258 = vand.u32 %v233, 4294901760
        %259 = vmatpush1.msra.mxu0 %v258
        %260 = vmatprep.subr.mxu0 0.0
        %v261 = vand.u32 %v234, 4294901760
        %262 = vmatpush1.msra.mxu0 %v261
        %263 = vmatprep.subr.mxu0 0.0
        %v264 = vand.u32 %v235, 4294901760
        %265 = vmatpush1.msra.mxu0 %v264
        %266 = vmatprep.subr.mxu0 0.0
        %v267 = vand.u32 %v236, 4294901760
        %268 = vmatpush1.msra.mxu0 %v267
        %269 = vmatprep.subr.mxu0 0.0
        %v270 = vand.u32 %v237, 4294901760
        %271 = vmatpush1.msra.mxu0 %v270
        %272 = vmatprep.subr.mxu0 0.0
        %v273 = vand.u32 %v238, 4294901760
        %274 = vmatpush1.msra.mxu0 %v273
        %275 = vmatprep.subr.mxu0 0.0
        %v276 = vand.u32 %v239, 4294901760
        %277 = vmatpush1.msra.mxu0 %v276
        %278 = vmatprep.subr.mxu0 0.0
        %v279 = vand.u32 %v240, 4294901760
        %280 = vmatpush1.msra.mxu0 %v279
        %281 = vmatprep.subr.mxu0 0.0
        %v282 = vand.u32 %v241, 4294901760
        %283 = vmatpush1.msra.mxu0 %v282
        %284 = vmatprep.subr.mxu0 0.0
        %v285 = vand.u32 %v242, 4294901760
        %286 = vmatpush1.msra.mxu0 %v285
        %287 = vmatprep.subr.mxu0 0.0
        %v288 = vand.u32 %v243, 4294901760
        %289 = vmatpush1.msra.mxu0 %v288
        %290 = vmatprep.subr.mxu0 0.0
        %v291 = vand.u32 %v244, 4294901760
        %292 = vmatpush1.msra.mxu0 %v291
        %293 = vmatprep.subr.mxu0 0.0
        %294 = vmatpush1.msra.mxu0 0.0
        %295 = vmatprep.subr.mxu0 0.0
        %296 = vmatpush1.msra.mxu0 0.0
        %297 = vmatprep.subr.mxu0 0.0
        %298 = vmatpush1.msra.mxu0 0.0
        %299 = vmatprep.subr.mxu0 0.0
        %300 = vmatpush1.msra.mxu0 0.0
        %301 = vmatprep.subr.mxu0 0.0
        %302 = vmatpush1.msra.mxu0 0.0
        %303 = vmatprep.subr.mxu0 0.0
        %304 = vmatpush1.msra.mxu0 0.0
        %305 = vmatprep.subr.mxu0 0.0
        %306 = vmatpush1.msra.mxu0 0.0
        %307 = vmatprep.subr.mxu0 0.0
        %308 = vmatpush1.msra.mxu0 0.0
        %309 = vmatprep.subr.mxu0 0.0
        %310 = vmatpush1.msra.mxu0 0.0
        %311 = vmatprep.subr.mxu0 0.0
        %312 = vmatpush1.msra.mxu0 0.0
        %313 = vmatprep.subr.mxu0 0.0
        %314 = vmatpush1.msra.mxu0 0.0
        %315 = vmatprep.subr.mxu0 0.0
        %316 = vmatpush1.msra.mxu0 0.0
        %317 = vmatprep.subr.mxu0 0.0
        %318 = vmatpush1.msra.mxu0 0.0
        %319 = vmatprep.subr.mxu0 0.0
        %320 = vmatpush1.msra.mxu0 0.0
        %321 = vmatprep.subr.mxu0 0.0
        %322 = vmatpush1.msra.mxu0 0.0
        %323 = vmatprep.subr.mxu0 0.0
        %324 = vmatpush1.msra.mxu0 0.0
        %325 = vmatprep.mubr.f32.mxu0 0.0
        %v326 = vand.u32 %v228, 4294901760
        %v327 = vsub.f32 %v228, %v326
        %v328 = vand.u32 %v327, 4294901760
        %v329 = vsub.f32 %v327, %v328
        %v330 = vand.u32 %v329, 4294901760
        %331 = vmatmul.mubr.f32.gmra.mrb[0].mxu0 %v330
        %v332 = vpop.f32.mrb[0].mxu0
        %v333 = vadd.f32 0.0, %v332
        %v334 = vpop.f32.mrb[0].mxu0
        %335 = vdwg.mxu0
        %336 = vmatprep.subr.mxu0 0.0
        %v337 = vand.u32 %v229, 4294901760
        %v338 = vsub.f32 %v229, %v337
        %v339 = vand.u32 %v338, 4294901760
        %v340 = vsub.f32 %v338, %v339
        %v341 = vand.u32 %v340, 4294901760
        %342 = vmatpush1.msra.mxu0 %v341
        %343 = vmatprep.subr.mxu0 0.0
        %v344 = vand.u32 %v230, 4294901760
        %v345 = vsub.f32 %v230, %v344
        %v346 = vand.u32 %v345, 4294901760
        %v347 = vsub.f32 %v345, %v346
        %v348 = vand.u32 %v347, 4294901760
        %349 = vmatpush1.msra.mxu0 %v348
        %350 = vmatprep.subr.mxu0 0.0
        %v351 = vand.u32 %v231, 4294901760
        %v352 = vsub.f32 %v231, %v351
        %v353 = vand.u32 %v352, 4294901760
        %v354 = vsub.f32 %v352, %v353
        %v355 = vand.u32 %v354, 4294901760
        %356 = vmatpush1.msra.mxu0 %v355
        %357 = vmatprep.subr.mxu0 0.0
        %v358 = vand.u32 %v232, 4294901760
        %v359 = vsub.f32 %v232, %v358
        %v360 = vand.u32 %v359, 4294901760
        %v361 = vsub.f32 %v359, %v360
        %v362 = vand.u32 %v361, 4294901760
        %363 = vmatpush1.msra.mxu0 %v362
        %364 = vmatprep.subr.mxu0 0.0
        %v365 = vand.u32 %v233, 4294901760
        %v366 = vsub.f32 %v233, %v365
        %v367 = vand.u32 %v366, 4294901760
        %v368 = vsub.f32 %v366, %v367
        %v369 = vand.u32 %v368, 4294901760
        %370 = vmatpush1.msra.mxu0 %v369
        %371 = vmatprep.subr.mxu0 0.0
        %v372 = vand.u32 %v234, 4294901760
        %v373 = vsub.f32 %v234, %v372
        %v374 = vand.u32 %v373, 4294901760
        %v375 = vsub.f32 %v373, %v374
        %v376 = vand.u32 %v375, 4294901760
        %377 = vmatpush1.msra.mxu0 %v376
        %378 = vmatprep.subr.mxu0 0.0
        %v379 = vand.u32 %v235, 4294901760
        %v380 = vsub.f32 %v235, %v379
        %v381 = vand.u32 %v380, 4294901760
        %v382 = vsub.f32 %v380, %v381
        %v383 = vand.u32 %v382, 4294901760
        %384 = vmatpush1.msra.mxu0 %v383
        %385 = vmatprep.subr.mxu0 0.0
        %v386 = vand.u32 %v236, 4294901760
        %v387 = vsub.f32 %v236, %v386
        %v388 = vand.u32 %v387, 4294901760
        %v389 = vsub.f32 %v387, %v388
        %v390 = vand.u32 %v389, 4294901760
        %391 = vmatpush1.msra.mxu0 %v390
        %392 = vmatprep.subr.mxu0 0.0
        %v393 = vand.u32 %v237, 4294901760
        %v394 = vsub.f32 %v237, %v393
        %v395 = vand.u32 %v394, 4294901760
        %v396 = vsub.f32 %v394, %v395
        %v397 = vand.u32 %v396, 4294901760
        %398 = vmatpush1.msra.mxu0 %v397
        %399 = vmatprep.subr.mxu0 0.0
        %v400 = vand.u32 %v238, 4294901760
        %v401 = vsub.f32 %v238, %v400
        %v402 = vand.u32 %v401, 4294901760
        %v403 = vsub.f32 %v401, %v402
        %v404 = vand.u32 %v403, 4294901760
        %405 = vmatpush1.msra.mxu0 %v404
        %406 = vmatprep.subr.mxu0 0.0
        %v407 = vand.u32 %v239, 4294901760
        %v408 = vsub.f32 %v239, %v407
        %v409 = vand.u32 %v408, 4294901760
        %v410 = vsub.f32 %v408, %v409
        %v411 = vand.u32 %v410, 4294901760
        %412 = vmatpush1.msra.mxu0 %v411
        %413 = vmatprep.subr.mxu0 0.0
        %v414 = vand.u32 %v240, 4294901760
        %v415 = vsub.f32 %v240, %v414
        %v416 = vand.u32 %v415, 4294901760
        %v417 = vsub.f32 %v415, %v416
        %v418 = vand.u32 %v417, 4294901760
        %419 = vmatpush1.msra.mxu0 %v418
        %420 = vmatprep.subr.mxu0 0.0
        %v421 = vand.u32 %v241, 4294901760
        %v422 = vsub.f32 %v241, %v421
        %v423 = vand.u32 %v422, 4294901760
        %v424 = vsub.f32 %v422, %v423
        %v425 = vand.u32 %v424, 4294901760
        %426 = vmatpush1.msra.mxu0 %v425
        %427 = vmatprep.subr.mxu0 0.0
        %v428 = vand.u32 %v242, 4294901760
        %v429 = vsub.f32 %v242, %v428
        %v430 = vand.u32 %v429, 4294901760
        %v431 = vsub.f32 %v429, %v430
        %v432 = vand.u32 %v431, 4294901760
        %433 = vmatpush1.msra.mxu0 %v432
        %434 = vmatprep.subr.mxu0 0.0
        %v435 = vand.u32 %v243, 4294901760
        %v436 = vsub.f32 %v243, %v435
        %v437 = vand.u32 %v436, 4294901760
        %v438 = vsub.f32 %v436, %v437
        %v439 = vand.u32 %v438, 4294901760
        %440 = vmatpush1.msra.mxu0 %v439
        %441 = vmatprep.subr.mxu0 0.0
        %v442 = vand.u32 %v244, 4294901760
        %v443 = vsub.f32 %v244, %v442
        %v444 = vand.u32 %v443, 4294901760
        %v445 = vsub.f32 %v443, %v444
        %v446 = vand.u32 %v445, 4294901760
        %447 = vmatpush1.msra.mxu0 %v446
        %448 = vmatprep.subr.mxu0 0.0
        %449 = vmatpush1.msra.mxu0 0.0
        %450 = vmatprep.subr.mxu0 0.0
        %451 = vmatpush1.msra.mxu0 0.0
        %452 = vmatprep.subr.mxu0 0.0
        %453 = vmatpush1.msra.mxu0 0.0
        %454 = vmatprep.subr.mxu0 0.0
        %455 = vmatpush1.msra.mxu0 0.0
        %456 = vmatprep.subr.mxu0 0.0
        %457 = vmatpush1.msra.mxu0 0.0
        %458 = vmatprep.subr.mxu0 0.0
        %459 = vmatpush1.msra.mxu0 0.0
        %460 = vmatprep.subr.mxu0 0.0
        %461 = vmatpush1.msra.mxu0 0.0
        %462 = vmatprep.subr.mxu0 0.0
        %463 = vmatpush1.msra.mxu0 0.0
        %464 = vmatprep.subr.mxu0 0.0
        %465 = vmatpush1.msra.mxu0 0.0
        %466 = vmatprep.subr.mxu0 0.0
        %467 = vmatpush1.msra.mxu0 0.0
        %468 = vmatprep.subr.mxu0 0.0
        %469 = vmatpush1.msra.mxu0 0.0
        %470 = vmatprep.subr.mxu0 0.0
        %471 = vmatpush1.msra.mxu0 0.0
        %472 = vmatprep.subr.mxu0 0.0
        %473 = vmatpush1.msra.mxu0 0.0
        %474 = vmatprep.subr.mxu0 0.0
        %475 = vmatpush1.msra.mxu0 0.0
        %476 = vmatprep.subr.mxu0 0.0
        %477 = vmatpush1.msra.mxu0 0.0
        %478 = vmatprep.subr.mxu0 0.0
        %479 = vmatpush1.msra.mxu0 0.0
        %480 = vmatprep.mubr.f32.mxu0 0.0
        %v481 = vand.u32 %v228, 4294901760
        %482 = vmatmul.mubr.f32.gmra.mrb[0].mxu0 %v481
        %v483 = vpop.f32.mrb[0].mxu0
        %v484 = vadd.f32 %v333, %v483
        %v485 = vpop.f32.mrb[0].mxu0
        %486 = vdwg.mxu0
        %487 = vmatprep.subr.mxu0 0.0
        %v488 = vand.u32 %v229, 4294901760
        %v489 = vsub.f32 %v229, %v488
        %490 = vmatpush1.msra.mxu0 %v489
        %491 = vmatprep.subr.mxu0 0.0
        %v492 = vand.u32 %v230, 4294901760
        %v493 = vsub.f32 %v230, %v492
        %494 = vmatpush1.msra.mxu0 %v493
        %495 = vmatprep.subr.mxu0 0.0
        %v496 = vand.u32 %v231, 4294901760
        %v497 = vsub.f32 %v231, %v496
        %498 = vmatpush1.msra.mxu0 %v497
        %499 = vmatprep.subr.mxu0 0.0
        %v500 = vand.u32 %v232, 4294901760
        %v501 = vsub.f32 %v232, %v500
        %502 = vmatpush1.msra.mxu0 %v501
        %503 = vmatprep.subr.mxu0 0.0
        %v504 = vand.u32 %v233, 4294901760
        %v505 = vsub.f32 %v233, %v504
        %506 = vmatpush1.msra.mxu0 %v505
        %507 = vmatprep.subr.mxu0 0.0
        %v508 = vand.u32 %v234, 4294901760
        %v509 = vsub.f32 %v234, %v508
        %510 = vmatpush1.msra.mxu0 %v509
        %511 = vmatprep.subr.mxu0 0.0
        %v512 = vand.u32 %v235, 4294901760
        %v513 = vsub.f32 %v235, %v512
        %514 = vmatpush1.msra.mxu0 %v513
        %515 = vmatprep.subr.mxu0 0.0
        %v516 = vand.u32 %v236, 4294901760
        %v517 = vsub.f32 %v236, %v516
        %518 = vmatpush1.msra.mxu0 %v517
        %519 = vmatprep.subr.mxu0 0.0
        %v520 = vand.u32 %v237, 4294901760
        %v521 = vsub.f32 %v237, %v520
        %522 = vmatpush1.msra.mxu0 %v521
        %523 = vmatprep.subr.mxu0 0.0
        %v524 = vand.u32 %v238, 4294901760
        %v525 = vsub.f32 %v238, %v524
        %526 = vmatpush1.msra.mxu0 %v525
        %527 = vmatprep.subr.mxu0 0.0
        %v528 = vand.u32 %v239, 4294901760
        %v529 = vsub.f32 %v239, %v528
        %530 = vmatpush1.msra.mxu0 %v529
        %531 = vmatprep.subr.mxu0 0.0
        %v532 = vand.u32 %v240, 4294901760
        %v533 = vsub.f32 %v240, %v532
        %534 = vmatpush1.msra.mxu0 %v533
        %535 = vmatprep.subr.mxu0 0.0
        %v536 = vand.u32 %v241, 4294901760
        %v537 = vsub.f32 %v241, %v536
        %538 = vmatpush1.msra.mxu0 %v537
        %539 = vmatprep.subr.mxu0 0.0
        %v540 = vand.u32 %v242, 4294901760
        %v541 = vsub.f32 %v242, %v540
        %542 = vmatpush1.msra.mxu0 %v541
        %543 = vmatprep.subr.mxu0 0.0
        %v544 = vand.u32 %v243, 4294901760
        %v545 = vsub.f32 %v243, %v544
        %546 = vmatpush1.msra.mxu0 %v545
        %547 = vmatprep.subr.mxu0 0.0
        %v548 = vand.u32 %v244, 4294901760
        %v549 = vsub.f32 %v244, %v548
        %550 = vmatpush1.msra.mxu0 %v549
        %551 = vmatprep.subr.mxu0 0.0
        %552 = vmatpush1.msra.mxu0 0.0
        %553 = vmatprep.subr.mxu0 0.0
        %554 = vmatpush1.msra.mxu0 0.0
        %555 = vmatprep.subr.mxu0 0.0
        %556 = vmatpush1.msra.mxu0 0.0
        %557 = vmatprep.subr.mxu0 0.0
        %558 = vmatpush1.msra.mxu0 0.0
        %559 = vmatprep.subr.mxu0 0.0
        %560 = vmatpush1.msra.mxu0 0.0
        %561 = vmatprep.subr.mxu0 0.0
        %562 = vmatpush1.msra.mxu0 0.0
        %563 = vmatprep.subr.mxu0 0.0
        %564 = vmatpush1.msra.mxu0 0.0
        %565 = vmatprep.subr.mxu0 0.0
        %566 = vmatpush1.msra.mxu0 0.0
        %567 = vmatprep.subr.mxu0 0.0
        %568 = vmatpush1.msra.mxu0 0.0
        %569 = vmatprep.subr.mxu0 0.0
        %570 = vmatpush1.msra.mxu0 0.0
        %571 = vmatprep.subr.mxu0 0.0
        %572 = vmatpush1.msra.mxu0 0.0
        %573 = vmatprep.subr.mxu0 0.0
        %574 = vmatpush1.msra.mxu0 0.0
        %575 = vmatprep.subr.mxu0 0.0
        %576 = vmatpush1.msra.mxu0 0.0
        %577 = vmatprep.subr.mxu0 0.0
        %578 = vmatpush1.msra.mxu0 0.0
        %579 = vmatprep.subr.mxu0 0.0
        %580 = vmatpush1.msra.mxu0 0.0
        %581 = vmatprep.subr.mxu0 0.0
        %582 = vmatpush1.msra.mxu0 0.0
        %583 = vmatprep.mubr.f32.mxu0 0.0
        %v584 = vand.u32 %v228, 4294901760
        %v585 = vsub.f32 %v228, %v584
        %586 = vmatmul.mubr.f32.gmra.mrb[0].mxu0 %v585
        %v587 = vpop.f32.mrb[0].mxu0
        %v588 = vadd.f32 %v484, %v587
        %v589 = vpop.f32.mrb[0].mxu0
        %590 = vdwg.mxu0
        %591 = vmatprep.subr.mxu0 0.0
        %v592 = vand.u32 %v229, 4294901760
        %593 = vmatpush1.msra.mxu0 %v592
        %594 = vmatprep.subr.mxu0 0.0
        %v595 = vand.u32 %v230, 4294901760
        %596 = vmatpush1.msra.mxu0 %v595
        %597 = vmatprep.subr.mxu0 0.0
        %v598 = vand.u32 %v231, 4294901760
        %599 = vmatpush1.msra.mxu0 %v598
        %600 = vmatprep.subr.mxu0 0.0
        %v601 = vand.u32 %v232, 4294901760
        %602 = vmatpush1.msra.mxu0 %v601
        %603 = vmatprep.subr.mxu0 0.0
        %v604 = vand.u32 %v233, 4294901760
        %605 = vmatpush1.msra.mxu0 %v604
        %606 = vmatprep.subr.mxu0 0.0
        %v607 = vand.u32 %v234, 4294901760
        %608 = vmatpush1.msra.mxu0 %v607
        %609 = vmatprep.subr.mxu0 0.0
        %v610 = vand.u32 %v235, 4294901760
        %611 = vmatpush1.msra.mxu0 %v610
        %612 = vmatprep.subr.mxu0 0.0
        %v613 = vand.u32 %v236, 4294901760
        %614 = vmatpush1.msra.mxu0 %v613
        %615 = vmatprep.subr.mxu0 0.0
        %v616 = vand.u32 %v237, 4294901760
        %617 = vmatpush1.msra.mxu0 %v616
        %618 = vmatprep.subr.mxu0 0.0
        %v619 = vand.u32 %v238, 4294901760
        %620 = vmatpush1.msra.mxu0 %v619
        %621 = vmatprep.subr.mxu0 0.0
        %v622 = vand.u32 %v239, 4294901760
        %623 = vmatpush1.msra.mxu0 %v622
        %624 = vmatprep.subr.mxu0 0.0
        %v625 = vand.u32 %v240, 4294901760
        %626 = vmatpush1.msra.mxu0 %v625
        %627 = vmatprep.subr.mxu0 0.0
        %v628 = vand.u32 %v241, 4294901760
        %629 = vmatpush1.msra.mxu0 %v628
        %630 = vmatprep.subr.mxu0 0.0
        %v631 = vand.u32 %v242, 4294901760
        %632 = vmatpush1.msra.mxu0 %v631
        %633 = vmatprep.subr.mxu0 0.0
        %v634 = vand.u32 %v243, 4294901760
        %635 = vmatpush1.msra.mxu0 %v634
        %636 = vmatprep.subr.mxu0 0.0
        %v637 = vand.u32 %v244, 4294901760
        %638 = vmatpush1.msra.mxu0 %v637
        %639 = vmatprep.subr.mxu0 0.0
        %640 = vmatpush1.msra.mxu0 0.0
        %641 = vmatprep.subr.mxu0 0.0
        %642 = vmatpush1.msra.mxu0 0.0
        %643 = vmatprep.subr.mxu0 0.0
        %644 = vmatpush1.msra.mxu0 0.0
        %645 = vmatprep.subr.mxu0 0.0
        %646 = vmatpush1.msra.mxu0 0.0
        %647 = vmatprep.subr.mxu0 0.0
        %648 = vmatpush1.msra.mxu0 0.0
        %649 = vmatprep.subr.mxu0 0.0
        %650 = vmatpush1.msra.mxu0 0.0
        %651 = vmatprep.subr.mxu0 0.0
        %652 = vmatpush1.msra.mxu0 0.0
        %653 = vmatprep.subr.mxu0 0.0
        %654 = vmatpush1.msra.mxu0 0.0
        %655 = vmatprep.subr.mxu0 0.0
        %656 = vmatpush1.msra.mxu0 0.0
        %657 = vmatprep.subr.mxu0 0.0
        %658 = vmatpush1.msra.mxu0 0.0
        %659 = vmatprep.subr.mxu0 0.0
        %660 = vmatpush1.msra.mxu0 0.0
        %661 = vmatprep.subr.mxu0 0.0
        %662 = vmatpush1.msra.mxu0 0.0
        %663 = vmatprep.subr.mxu0 0.0
        %664 = vmatpush1.msra.mxu0 0.0
        %665 = vmatprep.subr.mxu0 0.0
        %666 = vmatpush1.msra.mxu0 0.0
        %667 = vmatprep.subr.mxu0 0.0
        %668 = vmatpush1.msra.mxu0 0.0
        %669 = vmatprep.subr.mxu0 0.0
        %670 = vmatpush1.msra.mxu0 0.0
        %671 = vmatprep.mubr.f32.mxu0 0.0
        %v672 = vand.u32 %v228, 4294901760
        %v673 = vsub.f32 %v228, %v672
        %v674 = vand.u32 %v673, 4294901760
        %675 = vmatmul.mubr.f32.gmra.mrb[0].mxu0 %v674
        %v676 = vpop.f32.mrb[0].mxu0
        %v677 = vadd.f32 %v588, %v676
        %v678 = vpop.f32.mrb[0].mxu0
        %679 = vdwg.mxu0
        %680 = vmatprep.subr.mxu0 0.0
        %v681 = vand.u32 %v229, 4294901760
        %v682 = vsub.f32 %v229, %v681
        %v683 = vand.u32 %v682, 4294901760
        %684 = vmatpush1.msra.mxu0 %v683
        %685 = vmatprep.subr.mxu0 0.0
        %v686 = vand.u32 %v230, 4294901760
        %v687 = vsub.f32 %v230, %v686
        %v688 = vand.u32 %v687, 4294901760
        %689 = vmatpush1.msra.mxu0 %v688
        %690 = vmatprep.subr.mxu0 0.0
        %v691 = vand.u32 %v231, 4294901760
        %v692 = vsub.f32 %v231, %v691
        %v693 = vand.u32 %v692, 4294901760
        %694 = vmatpush1.msra.mxu0 %v693
        %695 = vmatprep.subr.mxu0 0.0
        %v696 = vand.u32 %v232, 4294901760
        %v697 = vsub.f32 %v232, %v696
        %v698 = vand.u32 %v697, 4294901760
        %699 = vmatpush1.msra.mxu0 %v698
        %700 = vmatprep.subr.mxu0 0.0
        %v701 = vand.u32 %v233, 4294901760
        %v702 = vsub.f32 %v233, %v701
        %v703 = vand.u32 %v702, 4294901760
        %704 = vmatpush1.msra.mxu0 %v703
        %705 = vmatprep.subr.mxu0 0.0
        %v706 = vand.u32 %v234, 4294901760
        %v707 = vsub.f32 %v234, %v706
        %v708 = vand.u32 %v707, 4294901760
        %709 = vmatpush1.msra.mxu0 %v708
        %710 = vmatprep.subr.mxu0 0.0
        %v711 = vand.u32 %v235, 4294901760
        %v712 = vsub.f32 %v235, %v711
        %v713 = vand.u32 %v712, 4294901760
        %714 = vmatpush1.msra.mxu0 %v713
        %715 = vmatprep.subr.mxu0 0.0
        %v716 = vand.u32 %v236, 4294901760
        %v717 = vsub.f32 %v236, %v716
        %v718 = vand.u32 %v717, 4294901760
        %719 = vmatpush1.msra.mxu0 %v718
        %720 = vmatprep.subr.mxu0 0.0
        %v721 = vand.u32 %v237, 4294901760
        %v722 = vsub.f32 %v237, %v721
        %v723 = vand.u32 %v722, 4294901760
        %724 = vmatpush1.msra.mxu0 %v723
        %725 = vmatprep.subr.mxu0 0.0
        %v726 = vand.u32 %v238, 4294901760
        %v727 = vsub.f32 %v238, %v726
        %v728 = vand.u32 %v727, 4294901760
        %729 = vmatpush1.msra.mxu0 %v728
        %730 = vmatprep.subr.mxu0 0.0
        %v731 = vand.u32 %v239, 4294901760
        %v732 = vsub.f32 %v239, %v731
        %v733 = vand.u32 %v732, 4294901760
        %734 = vmatpush1.msra.mxu0 %v733
        %735 = vmatprep.subr.mxu0 0.0
        %v736 = vand.u32 %v240, 4294901760
        %v737 = vsub.f32 %v240, %v736
        %v738 = vand.u32 %v737, 4294901760
        %739 = vmatpush1.msra.mxu0 %v738
        %740 = vmatprep.subr.mxu0 0.0
        %v741 = vand.u32 %v241, 4294901760
        %v742 = vsub.f32 %v241, %v741
        %v743 = vand.u32 %v742, 4294901760
        %744 = vmatpush1.msra.mxu0 %v743
        %745 = vmatprep.subr.mxu0 0.0
        %v746 = vand.u32 %v242, 4294901760
        %v747 = vsub.f32 %v242, %v746
        %v748 = vand.u32 %v747, 4294901760
        %749 = vmatpush1.msra.mxu0 %v748
        %750 = vmatprep.subr.mxu0 0.0
        %v751 = vand.u32 %v243, 4294901760
        %v752 = vsub.f32 %v243, %v751
        %v753 = vand.u32 %v752, 4294901760
        %754 = vmatpush1.msra.mxu0 %v753
        %755 = vmatprep.subr.mxu0 0.0
        %v756 = vand.u32 %v244, 4294901760
        %v757 = vsub.f32 %v244, %v756
        %v758 = vand.u32 %v757, 4294901760
        %759 = vmatpush1.msra.mxu0 %v758
        %760 = vmatprep.subr.mxu0 0.0
        %761 = vmatpush1.msra.mxu0 0.0
        %762 = vmatprep.subr.mxu0 0.0
        %763 = vmatpush1.msra.mxu0 0.0
        %764 = vmatprep.subr.mxu0 0.0
        %765 = vmatpush1.msra.mxu0 0.0
        %766 = vmatprep.subr.mxu0 0.0
        %767 = vmatpush1.msra.mxu0 0.0
        %768 = vmatprep.subr.mxu0 0.0
        %769 = vmatpush1.msra.mxu0 0.0
        %770 = vmatprep.subr.mxu0 0.0
        %771 = vmatpush1.msra.mxu0 0.0
        %772 = vmatprep.subr.mxu0 0.0
        %773 = vmatpush1.msra.mxu0 0.0
        %774 = vmatprep.subr.mxu0 0.0
        %775 = vmatpush1.msra.mxu0 0.0
        %776 = vmatprep.subr.mxu0 0.0
        %777 = vmatpush1.msra.mxu0 0.0
        %778 = vmatprep.subr.mxu0 0.0
        %779 = vmatpush1.msra.mxu0 0.0
        %780 = vmatprep.subr.mxu0 0.0
        %781 = vmatpush1.msra.mxu0 0.0
        %782 = vmatprep.subr.mxu0 0.0
        %783 = vmatpush1.msra.mxu0 0.0
        %784 = vmatprep.subr.mxu0 0.0
        %785 = vmatpush1.msra.mxu0 0.0
        %786 = vmatprep.subr.mxu0 0.0
        %787 = vmatpush1.msra.mxu0 0.0
        %788 = vmatprep.subr.mxu0 0.0
        %789 = vmatpush1.msra.mxu0 0.0
        %790 = vmatprep.subr.mxu0 0.0
        %791 = vmatpush1.msra.mxu0 0.0
        %792 = vmatprep.mubr.f32.mxu0 0.0
        %v793 = vand.u32 %v228, 4294901760
        %794 = vmatmul.mubr.f32.gmra.mrb[0].mxu0 %v793
        %v795 = vpop.f32.mrb[0].mxu0
        %v796 = vadd.f32 %v677, %v795
        %v797 = vpop.f32.mrb[0].mxu0
        %798 = vdwg.mxu0
        %799 = vmatprep.subr.mxu0 0.0
        %v800 = vand.u32 %v229, 4294901760
        %801 = vmatpush1.msra.mxu0 %v800
        %802 = vmatprep.subr.mxu0 0.0
        %v803 = vand.u32 %v230, 4294901760
        %804 = vmatpush1.msra.mxu0 %v803
        %805 = vmatprep.subr.mxu0 0.0
        %v806 = vand.u32 %v231, 4294901760
        %807 = vmatpush1.msra.mxu0 %v806
        %808 = vmatprep.subr.mxu0 0.0
        %v809 = vand.u32 %v232, 4294901760
        %810 = vmatpush1.msra.mxu0 %v809
        %811 = vmatprep.subr.mxu0 0.0
        %v812 = vand.u32 %v233, 4294901760
        %813 = vmatpush1.msra.mxu0 %v812
        %814 = vmatprep.subr.mxu0 0.0
        %v815 = vand.u32 %v234, 4294901760
        %816 = vmatpush1.msra.mxu0 %v815
        %817 = vmatprep.subr.mxu0 0.0
        %v818 = vand.u32 %v235, 4294901760
        %819 = vmatpush1.msra.mxu0 %v818
        %820 = vmatprep.subr.mxu0 0.0
        %v821 = vand.u32 %v236, 4294901760
        %822 = vmatpush1.msra.mxu0 %v821
        %823 = vmatprep.subr.mxu0 0.0
        %v824 = vand.u32 %v237, 4294901760
        %825 = vmatpush1.msra.mxu0 %v824
        %826 = vmatprep.subr.mxu0 0.0
        %v827 = vand.u32 %v238, 4294901760
        %828 = vmatpush1.msra.mxu0 %v827
        %829 = vmatprep.subr.mxu0 0.0
        %v830 = vand.u32 %v239, 4294901760
        %831 = vmatpush1.msra.mxu0 %v830
        %832 = vmatprep.subr.mxu0 0.0
        %v833 = vand.u32 %v240, 4294901760
        %834 = vmatpush1.msra.mxu0 %v833
        %835 = vmatprep.subr.mxu0 0.0
        %v836 = vand.u32 %v241, 4294901760
        %837 = vmatpush1.msra.mxu0 %v836
        %838 = vmatprep.subr.mxu0 0.0
        %v839 = vand.u32 %v242, 4294901760
        %840 = vmatpush1.msra.mxu0 %v839
        %841 = vmatprep.subr.mxu0 0.0
        %v842 = vand.u32 %v243, 4294901760
        %843 = vmatpush1.msra.mxu0 %v842
        %844 = vmatprep.subr.mxu0 0.0
        %v845 = vand.u32 %v244, 4294901760
        %846 = vmatpush1.msra.mxu0 %v845
        %847 = vmatprep.subr.mxu0 0.0
        %848 = vmatpush1.msra.mxu0 0.0
        %849 = vmatprep.subr.mxu0 0.0
        %850 = vmatpush1.msra.mxu0 0.0
        %851 = vmatprep.subr.mxu0 0.0
        %852 = vmatpush1.msra.mxu0 0.0
        %853 = vmatprep.subr.mxu0 0.0
        %854 = vmatpush1.msra.mxu0 0.0
        %855 = vmatprep.subr.mxu0 0.0
        %856 = vmatpush1.msra.mxu0 0.0
        %857 = vmatprep.subr.mxu0 0.0
        %858 = vmatpush1.msra.mxu0 0.0
        %859 = vmatprep.subr.mxu0 0.0
        %860 = vmatpush1.msra.mxu0 0.0
        %861 = vmatprep.subr.mxu0 0.0
        %862 = vmatpush1.msra.mxu0 0.0
        %863 = vmatprep.subr.mxu0 0.0
        %864 = vmatpush1.msra.mxu0 0.0
        %865 = vmatprep.subr.mxu0 0.0
        %866 = vmatpush1.msra.mxu0 0.0
        %867 = vmatprep.subr.mxu0 0.0
        %868 = vmatpush1.msra.mxu0 0.0
        %869 = vmatprep.subr.mxu0 0.0
        %870 = vmatpush1.msra.mxu0 0.0
        %871 = vmatprep.subr.mxu0 0.0
        %872 = vmatpush1.msra.mxu0 0.0
        %873 = vmatprep.subr.mxu0 0.0
        %874 = vmatpush1.msra.mxu0 0.0
        %875 = vmatprep.subr.mxu0 0.0
        %876 = vmatpush1.msra.mxu0 0.0
        %877 = vmatprep.subr.mxu0 0.0
        %878 = vmatpush1.msra.mxu0 0.0
        %879 = vmatprep.mubr.f32.mxu0 0.0
        %v880 = vand.u32 %v228, 4294901760
        %881 = vmatmul.mubr.f32.gmra.mrb[0].mxu0 %v880
        %v882 = vpop.f32.mrb[0].mxu0
        %v883 = vadd.f32 %v796, %v882
        %v884 = vpop.f32.mrb[0].mxu0
        %885 = vdwg.mxu0
        %v886 = vmul.f32 %v883, 0.03125
        %v887 = vsub.f32 %v228, %v886
        %v888 = vmul.f32 %v887, %v887
        %889 = vmatprep.subr.mxu0 0.0
        %v890 = vand.u32 %v229, 4294901760
        %891 = vmatpush1.msra.mxu0 %v890
        %892 = vmatprep.subr.mxu0 0.0
        %v893 = vand.u32 %v230, 4294901760
        %894 = vmatpush1.msra.mxu0 %v893
        %895 = vmatprep.subr.mxu0 0.0
        %v896 = vand.u32 %v231, 4294901760
        %897 = vmatpush1.msra.mxu0 %v896
        %898 = vmatprep.subr.mxu0 0.0
        %v899 = vand.u32 %v232, 4294901760
        %900 = vmatpush1.msra.mxu0 %v899
        %901 = vmatprep.subr.mxu0 0.0
        %v902 = vand.u32 %v233, 4294901760
        %903 = vmatpush1.msra.mxu0 %v902
        %904 = vmatprep.subr.mxu0 0.0
        %v905 = vand.u32 %v234, 4294901760
        %906 = vmatpush1.msra.mxu0 %v905
        %907 = vmatprep.subr.mxu0 0.0
        %v908 = vand.u32 %v235, 4294901760
        %909 = vmatpush1.msra.mxu0 %v908
        %910 = vmatprep.subr.mxu0 0.0
        %v911 = vand.u32 %v236, 4294901760
        %912 = vmatpush1.msra.mxu0 %v911
        %913 = vmatprep.subr.mxu0 0.0
        %v914 = vand.u32 %v237, 4294901760
        %915 = vmatpush1.msra.mxu0 %v914
        %916 = vmatprep.subr.mxu0 0.0
        %v917 = vand.u32 %v238, 4294901760
        %918 = vmatpush1.msra.mxu0 %v917
        %919 = vmatprep.subr.mxu0 0.0
        %v920 = vand.u32 %v239, 4294901760
        %921 = vmatpush1.msra.mxu0 %v920
        %922 = vmatprep.subr.mxu0 0.0
        %v923 = vand.u32 %v240, 4294901760
        %924 = vmatpush1.msra.mxu0 %v923
        %925 = vmatprep.subr.mxu0 0.0
        %v926 = vand.u32 %v241, 4294901760
        %927 = vmatpush1.msra.mxu0 %v926
        %928 = vmatprep.subr.mxu0 0.0
        %v929 = vand.u32 %v242, 4294901760
        %930 = vmatpush1.msra.mxu0 %v929
        %931 = vmatprep.subr.mxu0 0.0
        %v932 = vand.u32 %v243, 4294901760
        %933 = vmatpush1.msra.mxu0 %v932
        %934 = vmatprep.subr.mxu0 0.0
        %v935 = vand.u32 %v244, 4294901760
        %936 = vmatpush1.msra.mxu0 %v935
        %937 = vmatprep.subr.mxu0 0.0
        %938 = vmatpush1.msra.mxu0 0.0
        %939 = vmatprep.subr.mxu0 0.0
        %940 = vmatpush1.msra.mxu0 0.0
        %941 = vmatprep.subr.mxu0 0.0
        %942 = vmatpush1.msra.mxu0 0.0
        %943 = vmatprep.subr.mxu0 0.0
        %944 = vmatpush1.msra.mxu0 0.0
        %945 = vmatprep.subr.mxu0 0.0
        %946 = vmatpush1.msra.mxu0 0.0
        %947 = vmatprep.subr.mxu0 0.0
        %948 = vmatpush1.msra.mxu0 0.0
        %949 = vmatprep.subr.mxu0 0.0
        %950 = vmatpush1.msra.mxu0 0.0
        %951 = vmatprep.subr.mxu0 0.0
        %952 = vmatpush1.msra.mxu0 0.0
        %953 = vmatprep.subr.mxu0 0.0
        %954 = vmatpush1.msra.mxu0 0.0
        %955 = vmatprep.subr.mxu0 0.0
        %956 = vmatpush1.msra.mxu0 0.0
        %957 = vmatprep.subr.mxu0 0.0
        %958 = vmatpush1.msra.mxu0 0.0
        %959 = vmatprep.subr.mxu0 0.0
        %960 = vmatpush1.msra.mxu0 0.0
        %961 = vmatprep.subr.mxu0 0.0
        %962 = vmatpush1.msra.mxu0 0.0
        %963 = vmatprep.subr.mxu0 0.0
        %964 = vmatpush1.msra.mxu0 0.0
        %965 = vmatprep.subr.mxu0 0.0
        %966 = vmatpush1.msra.mxu0 0.0
        %967 = vmatprep.subr.mxu0 0.0
        %968 = vmatpush1.msra.mxu0 0.0
        %969 = vmatprep.mubr.f32.mxu0 0.0
        %v970 = vand.u32 %v888, 4294901760
        %v971 = vsub.f32 %v888, %v970
        %v972 = vand.u32 %v971, 4294901760
        %v973 = vsub.f32 %v971, %v972
        %v974 = vand.u32 %v973, 4294901760
        %975 = vmatmul.mubr.f32.gmra.mrb[0].mxu0 %v974
        %v976 = vpop.f32.mrb[0].mxu0
        %v977 = vadd.f32 0.0, %v976
        %v978 = vpop.f32.mrb[0].mxu0
        %979 = vdwg.mxu0
        %980 = vmatprep.subr.mxu0 0.0
        %v981 = vand.u32 %v229, 4294901760
        %v982 = vsub.f32 %v229, %v981
        %v983 = vand.u32 %v982, 4294901760
        %v984 = vsub.f32 %v982, %v983
        %v985 = vand.u32 %v984, 4294901760
        %986 = vmatpush1.msra.mxu0 %v985
        %987 = vmatprep.subr.mxu0 0.0
        %v988 = vand.u32 %v230, 4294901760
        %v989 = vsub.f32 %v230, %v988
        %v990 = vand.u32 %v989, 4294901760
        %v991 = vsub.f32 %v989, %v990
        %v992 = vand.u32 %v991, 4294901760
        %993 = vmatpush1.msra.mxu0 %v992
        %994 = vmatprep.subr.mxu0 0.0
        %v995 = vand.u32 %v231, 4294901760
        %v996 = vsub.f32 %v231, %v995
        %v997 = vand.u32 %v996, 4294901760
        %v998 = vsub.f32 %v996, %v997
        %v999 = vand.u32 %v998, 4294901760
        %1000 = vmatpush1.msra.mxu0 %v999
        %1001 = vmatprep.subr.mxu0 0.0
        %v1002 = vand.u32 %v232, 4294901760
        %v1003 = vsub.f32 %v232, %v1002
        %v1004 = vand.u32 %v1003, 4294901760
        %v1005 = vsub.f32 %v1003, %v1004
        %v1006 = vand.u32 %v1005, 4294901760
        %1007 = vmatpush1.msra.mxu0 %v1006
        %1008 = vmatprep.subr.mxu0 0.0
        %v1009 = vand.u32 %v233, 4294901760
        %v1010 = vsub.f32 %v233, %v1009
        %v1011 = vand.u32 %v1010, 4294901760
        %v1012 = vsub.f32 %v1010, %v1011
        %v1013 = vand.u32 %v1012, 4294901760
        %1014 = vmatpush1.msra.mxu0 %v1013
        %1015 = vmatprep.subr.mxu0 0.0
        %v1016 = vand.u32 %v234, 4294901760
        %v1017 = vsub.f32 %v234, %v1016
        %v1018 = vand.u32 %v1017, 4294901760
        %v1019 = vsub.f32 %v1017, %v1018
        %v1020 = vand.u32 %v1019, 4294901760
        %1021 = vmatpush1.msra.mxu0 %v1020
        %1022 = vmatprep.subr.mxu0 0.0
        %v1023 = vand.u32 %v235, 4294901760
        %v1024 = vsub.f32 %v235, %v1023
        %v1025 = vand.u32 %v1024, 4294901760
        %v1026 = vsub.f32 %v1024, %v1025
        %v1027 = vand.u32 %v1026, 4294901760
        %1028 = vmatpush1.msra.mxu0 %v1027
        %1029 = vmatprep.subr.mxu0 0.0
        %v1030 = vand.u32 %v236, 4294901760
        %v1031 = vsub.f32 %v236, %v1030
        %v1032 = vand.u32 %v1031, 4294901760
        %v1033 = vsub.f32 %v1031, %v1032
        %v1034 = vand.u32 %v1033, 4294901760
        %1035 = vmatpush1.msra.mxu0 %v1034
        %1036 = vmatprep.subr.mxu0 0.0
        %v1037 = vand.u32 %v237, 4294901760
        %v1038 = vsub.f32 %v237, %v1037
        %v1039 = vand.u32 %v1038, 4294901760
        %v1040 = vsub.f32 %v1038, %v1039
        %v1041 = vand.u32 %v1040, 4294901760
        %1042 = vmatpush1.msra.mxu0 %v1041
        %1043 = vmatprep.subr.mxu0 0.0
        %v1044 = vand.u32 %v238, 4294901760
        %v1045 = vsub.f32 %v238, %v1044
        %v1046 = vand.u32 %v1045, 4294901760
        %v1047 = vsub.f32 %v1045, %v1046
        %v1048 = vand.u32 %v1047, 4294901760
        %1049 = vmatpush1.msra.mxu0 %v1048
        %1050 = vmatprep.subr.mxu0 0.0
        %v1051 = vand.u32 %v239, 4294901760
        %v1052 = vsub.f32 %v239, %v1051
        %v1053 = vand.u32 %v1052, 4294901760
        %v1054 = vsub.f32 %v1052, %v1053
        %v1055 = vand.u32 %v1054, 4294901760
        %1056 = vmatpush1.msra.mxu0 %v1055
        %1057 = vmatprep.subr.mxu0 0.0
        %v1058 = vand.u32 %v240, 4294901760
        %v1059 = vsub.f32 %v240, %v1058
        %v1060 = vand.u32 %v1059, 4294901760
        %v1061 = vsub.f32 %v1059, %v1060
        %v1062 = vand.u32 %v1061, 4294901760
        %1063 = vmatpush1.msra.mxu0 %v1062
        %1064 = vmatprep.subr.mxu0 0.0
        %v1065 = vand.u32 %v241, 4294901760
        %v1066 = vsub.f32 %v241, %v1065
        %v1067 = vand.u32 %v1066, 4294901760
        %v1068 = vsub.f32 %v1066, %v1067
        %v1069 = vand.u32 %v1068, 4294901760
        %1070 = vmatpush1.msra.mxu0 %v1069
        %1071 = vmatprep.subr.mxu0 0.0
        %v1072 = vand.u32 %v242, 4294901760
        %v1073 = vsub.f32 %v242, %v1072
        %v1074 = vand.u32 %v1073, 4294901760
        %v1075 = vsub.f32 %v1073, %v1074
        %v1076 = vand.u32 %v1075, 4294901760
        %1077 = vmatpush1.msra.mxu0 %v1076
        %1078 = vmatprep.subr.mxu0 0.0
        %v1079 = vand.u32 %v243, 4294901760
        %v1080 = vsub.f32 %v243, %v1079
        %v1081 = vand.u32 %v1080, 4294901760
        %v1082 = vsub.f32 %v1080, %v1081
        %v1083 = vand.u32 %v1082, 4294901760
        %1084 = vmatpush1.msra.mxu0 %v1083
        %1085 = vmatprep.subr.mxu0 0.0
        %v1086 = vand.u32 %v244, 4294901760
        %v1087 = vsub.f32 %v244, %v1086
        %v1088 = vand.u32 %v1087, 4294901760
        %v1089 = vsub.f32 %v1087, %v1088
        %v1090 = vand.u32 %v1089, 4294901760
        %1091 = vmatpush1.msra.mxu0 %v1090
        %1092 = vmatprep.subr.mxu0 0.0
        %1093 = vmatpush1.msra.mxu0 0.0
        %1094 = vmatprep.subr.mxu0 0.0
        %1095 = vmatpush1.msra.mxu0 0.0
        %1096 = vmatprep.subr.mxu0 0.0
        %1097 = vmatpush1.msra.mxu0 0.0
        %1098 = vmatprep.subr.mxu0 0.0
        %1099 = vmatpush1.msra.mxu0 0.0
        %1100 = vmatprep.subr.mxu0 0.0
        %1101 = vmatpush1.msra.mxu0 0.0
        %1102 = vmatprep.subr.mxu0 0.0
        %1103 = vmatpush1.msra.mxu0 0.0
        %1104 = vmatprep.subr.mxu0 0.0
        %1105 = vmatpush1.msra.mxu0 0.0
        %1106 = vmatprep.subr.mxu0 0.0
        %1107 = vmatpush1.msra.mxu0 0.0
        %1108 = vmatprep.subr.mxu0 0.0
        %1109 = vmatpush1.msra.mxu0 0.0
        %1110 = vmatprep.subr.mxu0 0.0
        %1111 = vmatpush1.msra.mxu0 0.0
        %1112 = vmatprep.subr.mxu0 0.0
        %1113 = vmatpush1.msra.mxu0 0.0
        %1114 = vmatprep.subr.mxu0 0.0
        %1115 = vmatpush1.msra.mxu0 0.0
        %1116 = vmatprep.subr.mxu0 0.0
        %1117 = vmatpush1.msra.mxu0 0.0
        %1118 = vmatprep.subr.mxu0 0.0
        %1119 = vmatpush1.msra.mxu0 0.0
        %1120 = vmatprep.subr.mxu0 0.0
        %1121 = vmatpush1.msra.mxu0 0.0
        %1122 = vmatprep.subr.mxu0 0.0
        %1123 = vmatpush1.msra.mxu0 0.0
        %1124 = vmatprep.mubr.f32.mxu0 0.0
        %v1125 = vand.u32 %v888, 4294901760
        %1126 = vmatmul.mubr.f32.gmra.mrb[0].mxu0 %v1125
        %v1127 = vpop.f32.mrb[0].mxu0
        %v1128 = vadd.f32 %v977, %v1127
        %v1129 = vpop.f32.mrb[0].mxu0
        %1130 = vdwg.mxu0
        %1131 = vmatprep.subr.mxu0 0.0
        %v1132 = vand.u32 %v229, 4294901760
        %v1133 = vsub.f32 %v229, %v1132
        %1134 = vmatpush1.msra.mxu0 %v1133
        %1135 = vmatprep.subr.mxu0 0.0
        %v1136 = vand.u32 %v230, 4294901760
        %v1137 = vsub.f32 %v230, %v1136
        %1138 = vmatpush1.msra.mxu0 %v1137
        %1139 = vmatprep.subr.mxu0 0.0
        %v1140 = vand.u32 %v231, 4294901760
        %v1141 = vsub.f32 %v231, %v1140
        %1142 = vmatpush1.msra.mxu0 %v1141
        %1143 = vmatprep.subr.mxu0 0.0
        %v1144 = vand.u32 %v232, 4294901760
        %v1145 = vsub.f32 %v232, %v1144
        %1146 = vmatpush1.msra.mxu0 %v1145
        %1147 = vmatprep.subr.mxu0 0.0
        %v1148 = vand.u32 %v233, 4294901760
        %v1149 = vsub.f32 %v233, %v1148
        %1150 = vmatpush1.msra.mxu0 %v1149
        %1151 = vmatprep.subr.mxu0 0.0
        %v1152 = vand.u32 %v234, 4294901760
        %v1153 = vsub.f32 %v234, %v1152
        %1154 = vmatpush1.msra.mxu0 %v1153
        %1155 = vmatprep.subr.mxu0 0.0
        %v1156 = vand.u32 %v235, 4294901760
        %v1157 = vsub.f32 %v235, %v1156
        %1158 = vmatpush1.msra.mxu0 %v1157
        %1159 = vmatprep.subr.mxu0 0.0
        %v1160 = vand.u32 %v236, 4294901760
        %v1161 = vsub.f32 %v236, %v1160
        %1162 = vmatpush1.msra.mxu0 %v1161
        %1163 = vmatprep.subr.mxu0 0.0
        %v1164 = vand.u32 %v237, 4294901760
        %v1165 = vsub.f32 %v237, %v1164
        %1166 = vmatpush1.msra.mxu0 %v1165
        %1167 = vmatprep.subr.mxu0 0.0
        %v1168 = vand.u32 %v238, 4294901760
        %v1169 = vsub.f32 %v238, %v1168
        %1170 = vmatpush1.msra.mxu0 %v1169
        %1171 = vmatprep.subr.mxu0 0.0
        %v1172 = vand.u32 %v239, 4294901760
        %v1173 = vsub.f32 %v239, %v1172
        %1174 = vmatpush1.msra.mxu0 %v1173
        %1175 = vmatprep.subr.mxu0 0.0
        %v1176 = vand.u32 %v240, 4294901760
        %v1177 = vsub.f32 %v240, %v1176
        %1178 = vmatpush1.msra.mxu0 %v1177
        %1179 = vmatprep.subr.mxu0 0.0
        %v1180 = vand.u32 %v241, 4294901760
        %v1181 = vsub.f32 %v241, %v1180
        %1182 = vmatpush1.msra.mxu0 %v1181
        %1183 = vmatprep.subr.mxu0 0.0
        %v1184 = vand.u32 %v242, 4294901760
        %v1185 = vsub.f32 %v242, %v1184
        %1186 = vmatpush1.msra.mxu0 %v1185
        %1187 = vmatprep.subr.mxu0 0.0
        %v1188 = vand.u32 %v243, 4294901760
        %v1189 = vsub.f32 %v243, %v1188
        %1190 = vmatpush1.msra.mxu0 %v1189
        %1191 = vmatprep.subr.mxu0 0.0
        %v1192 = vand.u32 %v244, 4294901760
        %v1193 = vsub.f32 %v244, %v1192
        %1194 = vmatpush1.msra.mxu0 %v1193
        %1195 = vmatprep.subr.mxu0 0.0
        %1196 = vmatpush1.msra.mxu0 0.0
        %1197 = vmatprep.subr.mxu0 0.0
        %1198 = vmatpush1.msra.mxu0 0.0
        %1199 = vmatprep.subr.mxu0 0.0
        %1200 = vmatpush1.msra.mxu0 0.0
        %1201 = vmatprep.subr.mxu0 0.0
        %1202 = vmatpush1.msra.mxu0 0.0
        %1203 = vmatprep.subr.mxu0 0.0
        %1204 = vmatpush1.msra.mxu0 0.0
        %1205 = vmatprep.subr.mxu0 0.0
        %1206 = vmatpush1.msra.mxu0 0.0
        %1207 = vmatprep.subr.mxu0 0.0
        %1208 = vmatpush1.msra.mxu0 0.0
        %1209 = vmatprep.subr.mxu0 0.0
        %1210 = vmatpush1.msra.mxu0 0.0
        %1211 = vmatprep.subr.mxu0 0.0
        %1212 = vmatpush1.msra.mxu0 0.0
        %1213 = vmatprep.subr.mxu0 0.0
        %1214 = vmatpush1.msra.mxu0 0.0
        %1215 = vmatprep.subr.mxu0 0.0
        %1216 = vmatpush1.msra.mxu0 0.0
        %1217 = vmatprep.subr.mxu0 0.0
        %1218 = vmatpush1.msra.mxu0 0.0
        %1219 = vmatprep.subr.mxu0 0.0
        %1220 = vmatpush1.msra.mxu0 0.0
        %1221 = vmatprep.subr.mxu0 0.0
        %1222 = vmatpush1.msra.mxu0 0.0
        %1223 = vmatprep.subr.mxu0 0.0
        %1224 = vmatpush1.msra.mxu0 0.0
        %1225 = vmatprep.subr.mxu0 0.0
        %1226 = vmatpush1.msra.mxu0 0.0
        %1227 = vmatprep.mubr.f32.mxu0 0.0
        %v1228 = vand.u32 %v888, 4294901760
        %v1229 = vsub.f32 %v888, %v1228
        %1230 = vmatmul.mubr.f32.gmra.mrb[0].mxu0 %v1229
        %v1231 = vpop.f32.mrb[0].mxu0
        %v1232 = vadd.f32 %v1128, %v1231
        %v1233 = vpop.f32.mrb[0].mxu0
        %1234 = vdwg.mxu0
        %1235 = vmatprep.subr.mxu0 0.0
        %v1236 = vand.u32 %v229, 4294901760
        %1237 = vmatpush1.msra.mxu0 %v1236
        %1238 = vmatprep.subr.mxu0 0.0
        %v1239 = vand.u32 %v230, 4294901760
        %1240 = vmatpush1.msra.mxu0 %v1239
        %1241 = vmatprep.subr.mxu0 0.0
        %v1242 = vand.u32 %v231, 4294901760
        %1243 = vmatpush1.msra.mxu0 %v1242
        %1244 = vmatprep.subr.mxu0 0.0
        %v1245 = vand.u32 %v232, 4294901760
        %1246 = vmatpush1.msra.mxu0 %v1245
        %1247 = vmatprep.subr.mxu0 0.0
        %v1248 = vand.u32 %v233, 4294901760
        %1249 = vmatpush1.msra.mxu0 %v1248
        %1250 = vmatprep.subr.mxu0 0.0
        %v1251 = vand.u32 %v234, 4294901760
        %1252 = vmatpush1.msra.mxu0 %v1251
        %1253 = vmatprep.subr.mxu0 0.0
        %v1254 = vand.u32 %v235, 4294901760
        %1255 = vmatpush1.msra.mxu0 %v1254
        %1256 = vmatprep.subr.mxu0 0.0
        %v1257 = vand.u32 %v236, 4294901760
        %1258 = vmatpush1.msra.mxu0 %v1257
        %1259 = vmatprep.subr.mxu0 0.0
        %v1260 = vand.u32 %v237, 4294901760
        %1261 = vmatpush1.msra.mxu0 %v1260
        %1262 = vmatprep.subr.mxu0 0.0
        %v1263 = vand.u32 %v238, 4294901760
        %1264 = vmatpush1.msra.mxu0 %v1263
        %1265 = vmatprep.subr.mxu0 0.0
        %v1266 = vand.u32 %v239, 4294901760
        %1267 = vmatpush1.msra.mxu0 %v1266
        %1268 = vmatprep.subr.mxu0 0.0
        %v1269 = vand.u32 %v240, 4294901760
        %1270 = vmatpush1.msra.mxu0 %v1269
        %1271 = vmatprep.subr.mxu0 0.0
        %v1272 = vand.u32 %v241, 4294901760
        %1273 = vmatpush1.msra.mxu0 %v1272
        %1274 = vmatprep.subr.mxu0 0.0
        %v1275 = vand.u32 %v242, 4294901760
        %1276 = vmatpush1.msra.mxu0 %v1275
        %1277 = vmatprep.subr.mxu0 0.0
        %v1278 = vand.u32 %v243, 4294901760
        %1279 = vmatpush1.msra.mxu0 %v1278
        %1280 = vmatprep.subr.mxu0 0.0
        %v1281 = vand.u32 %v244, 4294901760
        %1282 = vmatpush1.msra.mxu0 %v1281
        %1283 = vmatprep.subr.mxu0 0.0
        %1284 = vmatpush1.msra.mxu0 0.0
        %1285 = vmatprep.subr.mxu0 0.0
        %1286 = vmatpush1.msra.mxu0 0.0
        %1287 = vmatprep.subr.mxu0 0.0
        %1288 = vmatpush1.msra.mxu0 0.0
        %1289 = vmatprep.subr.mxu0 0.0
        %1290 = vmatpush1.msra.mxu0 0.0
        %1291 = vmatprep.subr.mxu0 0.0
        %1292 = vmatpush1.msra.mxu0 0.0
        %1293 = vmatprep.subr.mxu0 0.0
        %1294 = vmatpush1.msra.mxu0 0.0
        %1295 = vmatprep.subr.mxu0 0.0
        %1296 = vmatpush1.msra.mxu0 0.0
        %1297 = vmatprep.subr.mxu0 0.0
        %1298 = vmatpush1.msra.mxu0 0.0
        %1299 = vmatprep.subr.mxu0 0.0
        %1300 = vmatpush1.msra.mxu0 0.0
        %1301 = vmatprep.subr.mxu0 0.0
        %1302 = vmatpush1.msra.mxu0 0.0
        %1303 = vmatprep.subr.mxu0 0.0
        %1304 = vmatpush1.msra.mxu0 0.0
        %1305 = vmatprep.subr.mxu0 0.0
        %1306 = vmatpush1.msra.mxu0 0.0
        %1307 = vmatprep.subr.mxu0 0.0
        %1308 = vmatpush1.msra.mxu0 0.0
        %1309 = vmatprep.subr.mxu0 0.0
        %1310 = vmatpush1.msra.mxu0 0.0
        %1311 = vmatprep.subr.mxu0 0.0
        %1312 = vmatpush1.msra.mxu0 0.0
        %1313 = vmatprep.subr.mxu0 0.0
        %1314 = vmatpush1.msra.mxu0 0.0
        %1315 = vmatprep.mubr.f32.mxu0 0.0
        %v1316 = vand.u32 %v888, 4294901760
        %v1317 = vsub.f32 %v888, %v1316
        %v1318 = vand.u32 %v1317, 4294901760
        %1319 = vmatmul.mubr.f32.gmra.mrb[0].mxu0 %v1318
        %v1320 = vpop.f32.mrb[0].mxu0
        %v1321 = vadd.f32 %v1232, %v1320
        %v1322 = vpop.f32.mrb[0].mxu0
        %1323 = vdwg.mxu0
        %1324 = vmatprep.subr.mxu0 0.0
        %v1325 = vand.u32 %v229, 4294901760
        %v1326 = vsub.f32 %v229, %v1325
        %v1327 = vand.u32 %v1326, 4294901760
        %1328 = vmatpush1.msra.mxu0 %v1327
        %1329 = vmatprep.subr.mxu0 0.0
        %v1330 = vand.u32 %v230, 4294901760
        %v1331 = vsub.f32 %v230, %v1330
        %v1332 = vand.u32 %v1331, 4294901760
        %1333 = vmatpush1.msra.mxu0 %v1332
        %1334 = vmatprep.subr.mxu0 0.0
        %v1335 = vand.u32 %v231, 4294901760
        %v1336 = vsub.f32 %v231, %v1335
        %v1337 = vand.u32 %v1336, 4294901760
        %1338 = vmatpush1.msra.mxu0 %v1337
        %1339 = vmatprep.subr.mxu0 0.0
        %v1340 = vand.u32 %v232, 4294901760
        %v1341 = vsub.f32 %v232, %v1340
        %v1342 = vand.u32 %v1341, 4294901760
        %1343 = vmatpush1.msra.mxu0 %v1342
        %1344 = vmatprep.subr.mxu0 0.0
        %v1345 = vand.u32 %v233, 4294901760
        %v1346 = vsub.f32 %v233, %v1345
        %v1347 = vand.u32 %v1346, 4294901760
        %1348 = vmatpush1.msra.mxu0 %v1347
        %1349 = vmatprep.subr.mxu0 0.0
        %v1350 = vand.u32 %v234, 4294901760
        %v1351 = vsub.f32 %v234, %v1350
        %v1352 = vand.u32 %v1351, 4294901760
        %1353 = vmatpush1.msra.mxu0 %v1352
        %1354 = vmatprep.subr.mxu0 0.0
        %v1355 = vand.u32 %v235, 4294901760
        %v1356 = vsub.f32 %v235, %v1355
        %v1357 = vand.u32 %v1356, 4294901760
        %1358 = vmatpush1.msra.mxu0 %v1357
        %1359 = vmatprep.subr.mxu0 0.0
        %v1360 = vand.u32 %v236, 4294901760
        %v1361 = vsub.f32 %v236, %v1360
        %v1362 = vand.u32 %v1361, 4294901760
        %1363 = vmatpush1.msra.mxu0 %v1362
        %1364 = vmatprep.subr.mxu0 0.0
        %v1365 = vand.u32 %v237, 4294901760
        %v1366 = vsub.f32 %v237, %v1365
        %v1367 = vand.u32 %v1366, 4294901760
        %1368 = vmatpush1.msra.mxu0 %v1367
        %1369 = vmatprep.subr.mxu0 0.0
        %v1370 = vand.u32 %v238, 4294901760
        %v1371 = vsub.f32 %v238, %v1370
        %v1372 = vand.u32 %v1371, 4294901760
        %1373 = vmatpush1.msra.mxu0 %v1372
        %1374 = vmatprep.subr.mxu0 0.0
        %v1375 = vand.u32 %v239, 4294901760
        %v1376 = vsub.f32 %v239, %v1375
        %v1377 = vand.u32 %v1376, 4294901760
        %1378 = vmatpush1.msra.mxu0 %v1377
        %1379 = vmatprep.subr.mxu0 0.0
        %v1380 = vand.u32 %v240, 4294901760
        %v1381 = vsub.f32 %v240, %v1380
        %v1382 = vand.u32 %v1381, 4294901760
        %1383 = vmatpush1.msra.mxu0 %v1382
        %1384 = vmatprep.subr.mxu0 0.0
        %v1385 = vand.u32 %v241, 4294901760
        %v1386 = vsub.f32 %v241, %v1385
        %v1387 = vand.u32 %v1386, 4294901760
        %1388 = vmatpush1.msra.mxu0 %v1387
        %1389 = vmatprep.subr.mxu0 0.0
        %v1390 = vand.u32 %v242, 4294901760
        %v1391 = vsub.f32 %v242, %v1390
        %v1392 = vand.u32 %v1391, 4294901760
        %1393 = vmatpush1.msra.mxu0 %v1392
        %1394 = vmatprep.subr.mxu0 0.0
        %v1395 = vand.u32 %v243, 4294901760
        %v1396 = vsub.f32 %v243, %v1395
        %v1397 = vand.u32 %v1396, 4294901760
        %1398 = vmatpush1.msra.mxu0 %v1397
        %1399 = vmatprep.subr.mxu0 0.0
        %v1400 = vand.u32 %v244, 4294901760
        %v1401 = vsub.f32 %v244, %v1400
        %v1402 = vand.u32 %v1401, 4294901760
        %1403 = vmatpush1.msra.mxu0 %v1402
        %1404 = vmatprep.subr.mxu0 0.0
        %1405 = vmatpush1.msra.mxu0 0.0
        %1406 = vmatprep.subr.mxu0 0.0
        %1407 = vmatpush1.msra.mxu0 0.0
        %1408 = vmatprep.subr.mxu0 0.0
        %1409 = vmatpush1.msra.mxu0 0.0
        %1410 = vmatprep.subr.mxu0 0.0
        %1411 = vmatpush1.msra.mxu0 0.0
        %1412 = vmatprep.subr.mxu0 0.0
        %1413 = vmatpush1.msra.mxu0 0.0
        %1414 = vmatprep.subr.mxu0 0.0
        %1415 = vmatpush1.msra.mxu0 0.0
        %1416 = vmatprep.subr.mxu0 0.0
        %1417 = vmatpush1.msra.mxu0 0.0
        %1418 = vmatprep.subr.mxu0 0.0
        %1419 = vmatpush1.msra.mxu0 0.0
        %1420 = vmatprep.subr.mxu0 0.0
        %1421 = vmatpush1.msra.mxu0 0.0
        %1422 = vmatprep.subr.mxu0 0.0
        %1423 = vmatpush1.msra.mxu0 0.0
        %1424 = vmatprep.subr.mxu0 0.0
        %1425 = vmatpush1.msra.mxu0 0.0
        %1426 = vmatprep.subr.mxu0 0.0
        %1427 = vmatpush1.msra.mxu0 0.0
        %1428 = vmatprep.subr.mxu0 0.0
        %1429 = vmatpush1.msra.mxu0 0.0
        %1430 = vmatprep.subr.mxu0 0.0
        %1431 = vmatpush1.msra.mxu0 0.0
        %1432 = vmatprep.subr.mxu0 0.0
        %1433 = vmatpush1.msra.mxu0 0.0
        %1434 = vmatprep.subr.mxu0 0.0
        %1435 = vmatpush1.msra.mxu0 0.0
        %1436 = vmatprep.mubr.f32.mxu0 0.0
        %v1437 = vand.u32 %v888, 4294901760
        %1438 = vmatmul.mubr.f32.gmra.mrb[0].mxu0 %v1437
        %v1439 = vpop.f32.mrb[0].mxu0
        %v1440 = vadd.f32 %v1321, %v1439
        %v1441 = vpop.f32.mrb[0].mxu0
        %1442 = vdwg.mxu0
        %1443 = vmatprep.subr.mxu0 0.0
        %v1444 = vand.u32 %v229, 4294901760
        %1445 = vmatpush1.msra.mxu0 %v1444
        %1446 = vmatprep.subr.mxu0 0.0
        %v1447 = vand.u32 %v230, 4294901760
        %1448 = vmatpush1.msra.mxu0 %v1447
        %1449 = vmatprep.subr.mxu0 0.0
        %v1450 = vand.u32 %v231, 4294901760
        %1451 = vmatpush1.msra.mxu0 %v1450
        %1452 = vmatprep.subr.mxu0 0.0
        %v1453 = vand.u32 %v232, 4294901760
        %1454 = vmatpush1.msra.mxu0 %v1453
        %1455 = vmatprep.subr.mxu0 0.0
        %v1456 = vand.u32 %v233, 4294901760
        %1457 = vmatpush1.msra.mxu0 %v1456
        %1458 = vmatprep.subr.mxu0 0.0
        %v1459 = vand.u32 %v234, 4294901760
        %1460 = vmatpush1.msra.mxu0 %v1459
        %1461 = vmatprep.subr.mxu0 0.0
        %v1462 = vand.u32 %v235, 4294901760
        %1463 = vmatpush1.msra.mxu0 %v1462
        %1464 = vmatprep.subr.mxu0 0.0
        %v1465 = vand.u32 %v236, 4294901760
        %1466 = vmatpush1.msra.mxu0 %v1465
        %1467 = vmatprep.subr.mxu0 0.0
        %v1468 = vand.u32 %v237, 4294901760
        %1469 = vmatpush1.msra.mxu0 %v1468
        %1470 = vmatprep.subr.mxu0 0.0
        %v1471 = vand.u32 %v238, 4294901760
        %1472 = vmatpush1.msra.mxu0 %v1471
        %1473 = vmatprep.subr.mxu0 0.0
        %v1474 = vand.u32 %v239, 4294901760
        %1475 = vmatpush1.msra.mxu0 %v1474
        %1476 = vmatprep.subr.mxu0 0.0
        %v1477 = vand.u32 %v240, 4294901760
        %1478 = vmatpush1.msra.mxu0 %v1477
        %1479 = vmatprep.subr.mxu0 0.0
        %v1480 = vand.u32 %v241, 4294901760
        %1481 = vmatpush1.msra.mxu0 %v1480
        %1482 = vmatprep.subr.mxu0 0.0
        %v1483 = vand.u32 %v242, 4294901760
        %1484 = vmatpush1.msra.mxu0 %v1483
        %1485 = vmatprep.subr.mxu0 0.0
        %v1486 = vand.u32 %v243, 4294901760
        %1487 = vmatpush1.msra.mxu0 %v1486
        %1488 = vmatprep.subr.mxu0 0.0
        %v1489 = vand.u32 %v244, 4294901760
        %1490 = vmatpush1.msra.mxu0 %v1489
        %1491 = vmatprep.subr.mxu0 0.0
        %1492 = vmatpush1.msra.mxu0 0.0
        %1493 = vmatprep.subr.mxu0 0.0
        %1494 = vmatpush1.msra.mxu0 0.0
        %1495 = vmatprep.subr.mxu0 0.0
        %1496 = vmatpush1.msra.mxu0 0.0
        %1497 = vmatprep.subr.mxu0 0.0
        %1498 = vmatpush1.msra.mxu0 0.0
        %1499 = vmatprep.subr.mxu0 0.0
        %1500 = vmatpush1.msra.mxu0 0.0
        %1501 = vmatprep.subr.mxu0 0.0
        %1502 = vmatpush1.msra.mxu0 0.0
        %1503 = vmatprep.subr.mxu0 0.0
        %1504 = vmatpush1.msra.mxu0 0.0
        %1505 = vmatprep.subr.mxu0 0.0
        %1506 = vmatpush1.msra.mxu0 0.0
        %1507 = vmatprep.subr.mxu0 0.0
        %1508 = vmatpush1.msra.mxu0 0.0
        %1509 = vmatprep.subr.mxu0 0.0
        %1510 = vmatpush1.msra.mxu0 0.0
        %1511 = vmatprep.subr.mxu0 0.0
        %1512 = vmatpush1.msra.mxu0 0.0
        %1513 = vmatprep.subr.mxu0 0.0
        %1514 = vmatpush1.msra.mxu0 0.0
        %1515 = vmatprep.subr.mxu0 0.0
        %1516 = vmatpush1.msra.mxu0 0.0
        %1517 = vmatprep.subr.mxu0 0.0
        %1518 = vmatpush1.msra.mxu0 0.0
        %1519 = vmatprep.subr.mxu0 0.0
        %1520 = vmatpush1.msra.mxu0 0.0
        %1521 = vmatprep.subr.mxu0 0.0
        %1522 = vmatpush1.msra.mxu0 0.0
        %1523 = vmatprep.mubr.f32.mxu0 0.0
        %v1524 = vand.u32 %v888, 4294901760
        %1525 = vmatmul.mubr.f32.gmra.mrb[0].mxu0 %v1524
        %v1526 = vpop.f32.mrb[0].mxu0
        %v1527 = vadd.f32 %v1440, %v1526
        %v1528 = vpop.f32.mrb[0].mxu0
        %1529 = vdwg.mxu0
        %v1530 = vmul.f32 %v1527, 0.03125
        %v1531 = vadd.f32 %v1530, 1e-05
        %v1532 = vrsqrt.pop %v1531
        %v1533 = vmul.f32 %v887, %v1532
        %v1534 = vld [vmem:[%s1] sm:$0x1]
        %v1536 = vlaneseq
        %v1537 = vshrl.u32 %v1536, 7
        %v1538 = vsub.s32 0, %v1537
        %v1539 = vrot.slane %v1534, %v1538
        %v1541 = vmul.f32 %v1533, %v1539
        %v1542 = vld [vmem:[%s2] sm:$0x1]
        %v1544 = vlaneseq
        %v1545 = vshrl.u32 %v1544, 7
        %v1546 = vsub.s32 0, %v1545
        %v1547 = vrot.slane %v1542, %v1546
        %v1549 = vadd.f32 %v1541, %v1547
        %1550 = vst [vmem:[%s227] sm:$0xff] %v1549
        %s1551 = sand.u32 %s119, 1
        %s1552 = scalar_lea.sflag [#allocation4], %s1551
        %s1553 = sand.u32 %s119, 1
        %s1554 = smul.addr %s1553, 8
        %s1555 = scalar_lea.vmem [#allocation7], %s1554
        // Predicated region
        $region45: #{tpu_custom_call.1} parent=35 // pred_check
          %p1556 = pneg %p129
        $region46: #{tpu_custom_call.1} parent=35 // pred_check_branch
          %1558 = sbr.rel (%p1556) target = $region48
        $region47: #{tpu_custom_call.1} parent=35 // pred_region
          %s1560 = ssub.s32 128, 128
          %1561 = vsyncadd %s1552, %s1560
          %s1562 = smul.addr %s22, 128
          %s1563 = scalar_lea.hbm %s4, %s1562
          %s1565 = sshll.u32 %s1555, 4
          %s1566 = int_to_ptr.vmem [resolvable:$true] %s1565
          %1568 = dma.vmem_to_hbm [thread:$0]  %s1566, 128, %s1563, %s1552
        $region48: #{tpu_custom_call.1} parent=35 // pred_fallthru
          _
      $region36: #{tpu_custom_call.1} parent=5 // pred_fallthru
        _
      %p1569 = scmp.le.s32.totalorder 2, %s17
      // Predicated region
      $region49: #{tpu_custom_call.1} parent=5 // pred_check
        %p1570 = pneg %p1569
      $region50: #{tpu_custom_call.1} parent=5 // pred_check_branch
        %1572 = sbr.rel (%p1570) target = $region52
      $region51: #{tpu_custom_call.1} parent=5 // pred_region
        %s1573 = ssub.s32 %s17, 2
        // Predicated region
        $region53: #{tpu_custom_call.1} parent=51 // pred_check
          %p1574 = pneg %p135
        $region54: #{tpu_custom_call.1} parent=51 // pred_check_branch
          %1576 = sbr.rel (%p1574) target = $region56
        $region55: #{tpu_custom_call.1} parent=51 // pred_region
          %s1577 = sand.u32 %s120, 1
          %s1578 = scalar_lea.sflag [#allocation4], %s1577
          %s1579 = sand.u32 %s120, 1
          %s1580 = smul.addr %s1579, 8
          %s1581 = scalar_lea.vmem [#allocation7], %s1580
          %1582 = dma.done %s1578, 128
        $region56: #{tpu_custom_call.1} parent=51 // pred_fallthru
          _
      $region52: #{tpu_custom_call.1} parent=5 // pred_fallthru
        _
    $region6: #{tpu_custom_call.1} parent=1 // loop_footer
      %s21 = sadd.s32 1, %s17
    $region7: #{tpu_custom_call.1} parent=1 // loop_footer_branch
      %16 = sbr.rel target = $region3
    $region8: #{tpu_custom_call.1} parent=1 // loop_exit
      _
    %1583 = vsyncpa [#allocation3], 1
    %s1584 = scalar_lea.sflag [#allocation3], 1
    %1585 = vsyncpa %s1584, 1
    %1586 = vsyncpa [#allocation6], 1
    %1587 = vsyncpa [#allocation4], 1
    %s1588 = scalar_lea.sflag [#allocation4], 1
    %1589 = vsyncpa %s1588, 1

</llo_original>
